<compile_context>
chip_gen: v6e
topology: v6e:2x2x1
jax: 0.10.0
libtpu: 0.0.40
codegen_flags: <defaults>
</compile_context>

<pallas_src>
import math
import functools

import jax
import jax.numpy as jnp
from jax.experimental import pallas as pl
from jax.experimental.pallas import tpu as pltpu

NUM_GROUPS = 32
EPS = 1e-5


def _round_up(v, m):
    return ((v + m - 1) // m) * m


def _attention_block_kernel(x_ref, gamma_ref, beta_ref, wqkv_ref, wproj_ref,
                            bproj_ref, gmat_ref, gmat_t_ref, o_ref,
                            *, num_heads, head_dim, group_size, eps):
    x = x_ref[0]                                            # (HW, Cp) f32
    HW, Cp = x.shape
    d = head_dim

    # ---- GroupNorm(32, C): stats via one-hot group matmuls ------------------
    # gmat has zero rows/cols for the padded channels, so they never enter the
    # statistics; padded gamma/beta are zero so y == 0 on padded lanes.
    sums = jnp.concatenate(
        [jnp.sum(x, axis=0, keepdims=True),
         jnp.sum(x * x, axis=0, keepdims=True)], axis=0)    # (2, Cp)
    sg = jnp.dot(sums, gmat_ref[...],
                 preferred_element_type=jnp.float32)        # (2, NG)
    n = jnp.float32(HW * group_size)
    mean_g = sg[0:1] / n
    var_g = sg[1:2] / n - mean_g * mean_g
    inv_g = jax.lax.rsqrt(var_g + eps)
    stats_c = jnp.dot(jnp.concatenate([mean_g, inv_g], axis=0),
                      gmat_t_ref[...],
                      preferred_element_type=jnp.float32)   # (2, Cp)
    # fused affine: y = x * a + b
    a = stats_c[1:2] * gamma_ref[...]                       # (1, Cp)
    b = beta_ref[...] - stats_c[0:1] * a                    # (1, Cp)
    y = (x * a + b).astype(jnp.bfloat16)                    # (HW, Cp) bf16

    # ---- qkv 1x1 conv (bf16 MXU, f32 accumulate) -----------------------------
    # wqkv columns are [Q_all | K_all | V_all]; attention scale already folded
    # into the Q and K weights on the host.
    qkv = jnp.dot(y, wqkv_ref[...],
                  preferred_element_type=jnp.float32).astype(jnp.bfloat16)

    # ---- multi-head attention with per-head projection accumulation ---------
    wproj = wproj_ref[...]                                  # (Cp, Cp) bf16
    acc = jnp.zeros((HW, Cp), jnp.float32)
    for h in range(num_heads):
        q = qkv[:, h * d:(h + 1) * d]                       # (HW, d) bf16
        k = qkv[:, Cp + h * d:Cp + (h + 1) * d]             # (HW, d) bf16
        v = qkv[:, 2 * Cp + h * d:2 * Cp + (h + 1) * d]     # (HW, d) bf16
        # attn[t, s] = sum_c q[t, c] * k[s, c]
        att = jax.lax.dot_general(q, k, (((1,), (1,)), ((), ())),
                                  preferred_element_type=jnp.float32)  # (HW,HW)
        att = att - jnp.max(att, axis=-1, keepdims=True)
        p = jnp.exp(att)
        p = p * pl.reciprocal(jnp.sum(p, axis=-1, keepdims=True), approx=True)
        # Project this head's V through its Wproj rows first: the big matmul is
        # then (HW,HW)x(HW,Cp), and no lane-dim concat of head outputs is needed.
        vproj = jnp.dot(v, wproj[h * d:(h + 1) * d, :],
                        preferred_element_type=jnp.float32).astype(jnp.bfloat16)
        acc = acc + jnp.dot(p.astype(jnp.bfloat16), vproj,
                            preferred_element_type=jnp.float32)

    # ---- proj bias + residual (padded lanes stay exactly zero) ---------------
    o_ref[0] = (acc + bproj_ref[...] + x).astype(o_ref.dtype)


def attention_block(x_nchw, gamma, beta, wqkv, wproj, bproj, *, num_heads):
    """x_nchw: (B, C, H, W) f32; wqkv (3C, C), wproj (C, C) in torch 1x1-conv layout."""
    B, C, H, W = x_nchw.shape
    HW = H * W
    assert C % NUM_GROUPS == 0 and C % num_heads == 0
    d = C // num_heads
    g_size = C // NUM_GROUPS
    Cp = _round_up(C, 128)                                   # lane-dense channels
    scale = 1.0 / math.sqrt(math.sqrt(d))

    # glue: NCHW -> (B, HW, Cp) with zero channel padding
    x = jnp.transpose(x_nchw.reshape(B, C, HW), (0, 2, 1))
    x = jnp.pad(x, ((0, 0), (0, 0), (0, Cp - C)))

    # Permute qkv weight rows to [Q_all | K_all | V_all] (head-major inside each
    # block), fold the attention scale into Q and K, transpose to (Cin, Cout),
    # zero-pad each block to Cp, cast to bf16 for the MXU.
    w = wqkv.reshape(num_heads, 3, d, C)
    wq = (w[:, 0] * scale).reshape(C, C)
    wk = (w[:, 1] * scale).reshape(C, C)
    wv = w[:, 2].reshape(C, C)
    wqkv_t = jnp.zeros((Cp, 3 * Cp), jnp.float32)
    wqkv_t = wqkv_t.at[:C, 0:C].set(wq.T)
    wqkv_t = wqkv_t.at[:C, Cp:Cp + C].set(wk.T)
    wqkv_t = wqkv_t.at[:C, 2 * Cp:2 * Cp + C].set(wv.T)
    wqkv_t = wqkv_t.astype(jnp.bfloat16)

    wproj_t = jnp.zeros((Cp, Cp), jnp.float32).at[:C, :C].set(wproj.T)
    wproj_t = wproj_t.astype(jnp.bfloat16)

    gamma_p = jnp.zeros((1, Cp), jnp.float32).at[0, :C].set(gamma)
    beta_p = jnp.zeros((1, Cp), jnp.float32).at[0, :C].set(beta)
    bproj_p = jnp.zeros((1, Cp), jnp.float32).at[0, :C].set(bproj)

    ch = jnp.arange(Cp)
    gmat = ((ch[:, None] // g_size == jnp.arange(NUM_GROUPS)[None, :])
            & (ch[:, None] < C)).astype(jnp.float32)          # (Cp, NG)
    gmat_t = gmat.T                                           # (NG, Cp)

    kernel = functools.partial(_attention_block_kernel,
                               num_heads=num_heads, head_dim=d,
                               group_size=g_size, eps=EPS)

    out = pl.pallas_call(
        kernel,
        out_shape=jax.ShapeDtypeStruct((B, HW, Cp), x_nchw.dtype),
        grid_spec=pltpu.PrefetchScalarGridSpec(
            num_scalar_prefetch=0,
            grid=(B,),
            in_specs=[
                pl.BlockSpec((1, HW, Cp), lambda b: (b, 0, 0)),          # x
                pl.BlockSpec((1, Cp), lambda b: (0, 0)),                 # gamma
                pl.BlockSpec((1, Cp), lambda b: (0, 0)),                 # beta
                pl.BlockSpec((Cp, 3 * Cp), lambda b: (0, 0)),            # Wqkv^T (bf16)
                pl.BlockSpec((Cp, Cp), lambda b: (0, 0)),                # Wproj^T (bf16)
                pl.BlockSpec((1, Cp), lambda b: (0, 0)),                 # bproj
                pl.BlockSpec((Cp, NUM_GROUPS), lambda b: (0, 0)),        # group one-hot
                pl.BlockSpec((NUM_GROUPS, Cp), lambda b: (0, 0)),        # its transpose
            ],
            out_specs=pl.BlockSpec((1, HW, Cp), lambda b: (b, 0, 0)),
        ),
        compiler_params=pltpu.CompilerParams(
            dimension_semantics=("parallel",),
            vmem_limit_bytes=32 * 1024 * 1024),
    )(x, gamma_p, beta_p, wqkv_t, wproj_t, bproj_p, gmat, gmat_t)

    # glue: (B, HW, Cp) -> drop channel padding -> NCHW
    return jnp.transpose(out[:, :, :C], (0, 2, 1)).reshape(B, C, H, W)


def reference(x, gamma, beta, wqkv, wproj, bproj, *, num_heads):
    """Pure-JAX f32 replica of the PyTorch forward (NCHW)."""
    B, C, H, W = x.shape
    xg = x.reshape(B, NUM_GROUPS, C // NUM_GROUPS, H, W)
    mean = xg.mean(axis=(2, 3, 4), keepdims=True)
    var = xg.var(axis=(2, 3, 4), keepdims=True)
    y = (xg - mean) / jnp.sqrt(var + EPS)
    y = y.reshape(B, C, H, W) * gamma[None, :, None, None] + beta[None, :, None, None]
    qkv = jnp.einsum('oc,bchw->bohw', wqkv, y)
    qkv = qkv.reshape(B * num_heads, 3 * (C // num_heads), H * W)
    d = C // num_heads
    q, k, v = qkv[:, :d], qkv[:, d:2 * d], qkv[:, 2 * d:]
    scale = 1.0 / math.sqrt(math.sqrt(C // num_heads))
    attn = jnp.einsum('bct,bcs->bts', q * scale, k * scale)
    attn = jax.nn.softmax(attn, axis=-1)
    h = jnp.einsum('bts,bcs->bct', attn, v)
    h = h.reshape(B, C, H, W)
    h = jnp.einsum('oc,bchw->bohw', wproj, h) + bproj[None, :, None, None]
    return h + x


if __name__ == "__main__":
    B, C, H, W = 2, 64, 8, 8
    num_heads = 2

    key = jax.random.PRNGKey(0)
    k1, k2, k3, k4, k5, k6 = jax.random.split(key, 6)
    x = jax.random.normal(k1, (B, C, H, W), jnp.float32)
    # deterministic synthetic parameters (module __init__ shapes, no checkpoint)
    gamma = 1.0 + 0.1 * jax.random.normal(k2, (C,), jnp.float32)       # GroupNorm weight
    beta = 0.1 * jax.random.normal(k3, (C,), jnp.float32)              # GroupNorm bias
    wqkv = jax.random.normal(k4, (3 * C, C), jnp.float32) / math.sqrt(C)   # Conv2d(C,3C,1,bias=False)
    wproj = jax.random.normal(k5, (C, C), jnp.float32) / math.sqrt(C)      # Conv2d(C,C,1)
    bproj = 0.1 * jax.random.normal(k6, (C,), jnp.float32)

    out = attention_block(x, gamma, beta, wqkv, wproj, bproj, num_heads=num_heads)
    out = jax.block_until_ready(out)

    ref = reference(x, gamma, beta, wqkv, wproj, bproj, num_heads=num_heads)
    assert out.shape == (B, C, H, W) and out.dtype == jnp.float32
    # bf16 MXU operands + approx reciprocal => looser tolerance vs f32 reference
    assert jnp.allclose(out, ref, rtol=5e-2, atol=5e-2), "mismatch vs reference"
    print("KERNEL_OK")
</pallas_src>

<mosaic_0001>
module attributes {stable_mosaic.version = 11 : i64} {
  func.func @_attention_block_kernel(%arg0: i32, %arg1: memref<1x64x128xf32, #tpu.memory_space<vmem>>, %arg2: memref<1x128xf32, #tpu.memory_space<vmem>>, %arg3: memref<1x128xf32, #tpu.memory_space<vmem>>, %arg4: memref<128x384xbf16, #tpu.memory_space<vmem>>, %arg5: memref<128x128xbf16, #tpu.memory_space<vmem>>, %arg6: memref<1x128xf32, #tpu.memory_space<vmem>>, %arg7: memref<128x32xf32, #tpu.memory_space<vmem>>, %arg8: memref<32x128xf32, #tpu.memory_space<vmem>>, %arg9: memref<1x64x128xf32, #tpu.memory_space<vmem>>) attributes {dimension_semantics = [#tpu.dimension_semantics<parallel>], iteration_bounds = array<i64: 2>, scalar_prefetch = 0 : i64, scratch_operands = 0 : i64, tpu.core_type = #tpu.core_type<tc>, window_params = [{transform_indices = @transform_0, window_bounds = array<i64: 1, 64, 128>}, {pipeline_mode = #tpu.pipeline_mode<synchronous>, transform_indices = @transform_1, window_bounds = array<i64: 1, 128>}, {pipeline_mode = #tpu.pipeline_mode<synchronous>, transform_indices = @transform_2, window_bounds = array<i64: 1, 128>}, {pipeline_mode = #tpu.pipeline_mode<synchronous>, transform_indices = @transform_3, window_bounds = array<i64: 128, 384>}, {pipeline_mode = #tpu.pipeline_mode<synchronous>, transform_indices = @transform_4, window_bounds = array<i64: 128, 128>}, {pipeline_mode = #tpu.pipeline_mode<synchronous>, transform_indices = @transform_5, window_bounds = array<i64: 1, 128>}, {pipeline_mode = #tpu.pipeline_mode<synchronous>, transform_indices = @transform_6, window_bounds = array<i64: 128, 32>}, {pipeline_mode = #tpu.pipeline_mode<synchronous>, transform_indices = @transform_7, window_bounds = array<i64: 32, 128>}, {transform_indices = @transform_8, window_bounds = array<i64: 1, 64, 128>}]} {
    %c0 = arith.constant 0 : index
    %c0_0 = arith.constant 0 : index
    %c0_1 = arith.constant 0 : index
    %0 = vector.load %arg1[%c0, %c0_0, %c0_1] : memref<1x64x128xf32, #tpu.memory_space<vmem>>, vector<1x64x128xf32>
    %1 = vector.shape_cast %0 : vector<1x64x128xf32> to vector<64x128xf32>
    %cst = arith.constant dense<0.000000e+00> : vector<128xf32>
    %2 = vector.multi_reduction <add>, %1, %cst [0] : vector<64x128xf32> to vector<128xf32>
    %3 = vector.shape_cast %2 : vector<128xf32> to vector<1x128xf32>
    %4 = arith.mulf %1, %1 : vector<64x128xf32>
    %cst_2 = arith.constant dense<0.000000e+00> : vector<128xf32>
    %5 = vector.multi_reduction <add>, %4, %cst_2 [0] : vector<64x128xf32> to vector<128xf32>
    %6 = vector.shape_cast %5 : vector<128xf32> to vector<1x128xf32>
    %7 = tpu.concatenate %3, %6 in 0 : vector<1x128xf32>, vector<1x128xf32> -> vector<2x128xf32>
    %c0_3 = arith.constant 0 : index
    %c0_4 = arith.constant 0 : index
    %8 = vector.load %arg7[%c0_3, %c0_4] : memref<128x32xf32, #tpu.memory_space<vmem>>, vector<128x32xf32>
    %cst_5 = arith.constant dense<0.000000e+00> : vector<2x32xf32>
    %9 = tpu.matmul %7, %8, %cst_5 {dimension_numbers = #tpu.dot_dimension_numbers<[1], [0], [0], [1], [0, 0, 1, 1], [], []>} : vector<2x128xf32>, vector<128x32xf32>, vector<2x32xf32> -> vector<2x32xf32>
    %10 = vector.extract_strided_slice %9 {offsets = [0, 0], sizes = [1, 32], strides = [1, 1]} : vector<2x32xf32> to vector<1x32xf32>
    %cst_6 = arith.constant 1.280000e+02 : f32
    %11 = vector.broadcast %cst_6 : f32 to vector<1x32xf32>
    %12 = arith.divf %10, %11 : vector<1x32xf32>
    %13 = vector.extract_strided_slice %9 {offsets = [1, 0], sizes = [1, 32], strides = [1, 1]} : vector<2x32xf32> to vector<1x32xf32>
    %cst_7 = arith.constant 1.280000e+02 : f32
    %14 = vector.broadcast %cst_7 : f32 to vector<1x32xf32>
    %15 = arith.divf %13, %14 : vector<1x32xf32>
    %16 = arith.mulf %12, %12 : vector<1x32xf32>
    %17 = arith.subf %15, %16 : vector<1x32xf32>
    %cst_8 = arith.constant 9.99999974E-6 : f32
    %18 = vector.broadcast %cst_8 : f32 to vector<1x32xf32>
    %19 = arith.addf %17, %18 : vector<1x32xf32>
    %20 = math.rsqrt %19 : vector<1x32xf32>
    %21 = tpu.concatenate %12, %20 in 0 : vector<1x32xf32>, vector<1x32xf32> -> vector<2x32xf32>
    %c0_9 = arith.constant 0 : index
    %c0_10 = arith.constant 0 : index
    %22 = vector.load %arg8[%c0_9, %c0_10] : memref<32x128xf32, #tpu.memory_space<vmem>>, vector<32x128xf32>
    %cst_11 = arith.constant dense<0.000000e+00> : vector<2x128xf32>
    %23 = tpu.matmul %21, %22, %cst_11 {dimension_numbers = #tpu.dot_dimension_numbers<[1], [0], [0], [1], [0, 0, 1, 1], [], []>} : vector<2x32xf32>, vector<32x128xf32>, vector<2x128xf32> -> vector<2x128xf32>
    %24 = vector.extract_strided_slice %23 {offsets = [1, 0], sizes = [1, 128], strides = [1, 1]} : vector<2x128xf32> to vector<1x128xf32>
    %c0_12 = arith.constant 0 : index
    %c0_13 = arith.constant 0 : index
    %25 = vector.load %arg2[%c0_12, %c0_13] : memref<1x128xf32, #tpu.memory_space<vmem>>, vector<1x128xf32>
    %26 = arith.mulf %24, %25 : vector<1x128xf32>
    %c0_14 = arith.constant 0 : index
    %c0_15 = arith.constant 0 : index
    %27 = vector.load %arg3[%c0_14, %c0_15] : memref<1x128xf32, #tpu.memory_space<vmem>>, vector<1x128xf32>
    %28 = vector.extract_strided_slice %23 {offsets = [0, 0], sizes = [1, 128], strides = [1, 1]} : vector<2x128xf32> to vector<1x128xf32>
    %29 = arith.mulf %28, %26 : vector<1x128xf32>
    %30 = arith.subf %27, %29 : vector<1x128xf32>
    %31 = vector.broadcast %26 : vector<1x128xf32> to vector<64x128xf32>
    %32 = arith.mulf %1, %31 : vector<64x128xf32>
    %33 = vector.broadcast %30 : vector<1x128xf32> to vector<64x128xf32>
    %34 = arith.addf %32, %33 : vector<64x128xf32>
    %35 = arith.truncf %34 : vector<64x128xf32> to vector<64x128xbf16>
    %c0_16 = arith.constant 0 : index
    %c0_17 = arith.constant 0 : index
    %36 = vector.load %arg4[%c0_16, %c0_17] : memref<128x384xbf16, #tpu.memory_space<vmem>>, vector<128x384xbf16>
    %cst_18 = arith.constant dense<0.000000e+00> : vector<64x384xf32>
    %37 = tpu.matmul %35, %36, %cst_18 {dimension_numbers = #tpu.dot_dimension_numbers<[1], [0], [0], [1], [0, 0, 1, 1], [], []>} : vector<64x128xbf16>, vector<128x384xbf16>, vector<64x384xf32> -> vector<64x384xf32>
    %38 = arith.truncf %37 : vector<64x384xf32> to vector<64x384xbf16>
    %c0_19 = arith.constant 0 : index
    %c0_20 = arith.constant 0 : index
    %39 = vector.load %arg5[%c0_19, %c0_20] : memref<128x128xbf16, #tpu.memory_space<vmem>>, vector<128x128xbf16>
    %cst_21 = arith.constant 0.000000e+00 : f32
    %40 = vector.broadcast %cst_21 : f32 to vector<64x128xf32>
    %41 = vector.extract_strided_slice %38 {offsets = [0, 0], sizes = [64, 32], strides = [1, 1]} : vector<64x384xbf16> to vector<64x32xbf16>
    %42 = vector.extract_strided_slice %38 {offsets = [0, 128], sizes = [64, 32], strides = [1, 1]} : vector<64x384xbf16> to vector<64x32xbf16>
    %43 = vector.extract_strided_slice %38 {offsets = [0, 256], sizes = [64, 32], strides = [1, 1]} : vector<64x384xbf16> to vector<64x32xbf16>
    %cst_22 = arith.constant dense<0.000000e+00> : vector<64x64xf32>
    %44 = tpu.matmul %41, %42, %cst_22 {dimension_numbers = #tpu.dot_dimension_numbers<[1], [1], [0], [0], [0, 0, 1, 0], [], []>} : vector<64x32xbf16>, vector<64x32xbf16>, vector<64x64xf32> -> vector<64x64xf32>
    %cst_23 = arith.constant dense<0xFF800000> : vector<64xf32>
    %45 = vector.multi_reduction <maximumf>, %44, %cst_23 [1] : vector<64x64xf32> to vector<64xf32>
    %46 = vector.shape_cast %45 : vector<64xf32> to vector<64x1xf32>
    %47 = vector.broadcast %46 : vector<64x1xf32> to vector<64x64xf32>
    %48 = arith.subf %44, %47 : vector<64x64xf32>
    %49 = math.exp %48 : vector<64x64xf32>
    %cst_24 = arith.constant dense<0.000000e+00> : vector<64xf32>
    %50 = vector.multi_reduction <add>, %49, %cst_24 [1] : vector<64x64xf32> to vector<64xf32>
    %51 = vector.shape_cast %50 : vector<64xf32> to vector<64x1xf32>
    %52 = tpu.reciprocal %51 {approx = true} : vector<64x1xf32> -> vector<64x1xf32>
    %53 = vector.broadcast %52 : vector<64x1xf32> to vector<64x64xf32>
    %54 = arith.mulf %49, %53 : vector<64x64xf32>
    %55 = vector.extract_strided_slice %39 {offsets = [0, 0], sizes = [32, 128], strides = [1, 1]} : vector<128x128xbf16> to vector<32x128xbf16>
    %cst_25 = arith.constant dense<0.000000e+00> : vector<64x128xf32>
    %56 = tpu.matmul %43, %55, %cst_25 {dimension_numbers = #tpu.dot_dimension_numbers<[1], [0], [0], [1], [0, 0, 1, 1], [], []>} : vector<64x32xbf16>, vector<32x128xbf16>, vector<64x128xf32> -> vector<64x128xf32>
    %57 = arith.truncf %56 : vector<64x128xf32> to vector<64x128xbf16>
    %58 = arith.truncf %54 : vector<64x64xf32> to vector<64x64xbf16>
    %cst_26 = arith.constant dense<0.000000e+00> : vector<64x128xf32>
    %59 = tpu.matmul %58, %57, %cst_26 {dimension_numbers = #tpu.dot_dimension_numbers<[1], [0], [0], [1], [0, 0, 1, 1], [], []>} : vector<64x64xbf16>, vector<64x128xbf16>, vector<64x128xf32> -> vector<64x128xf32>
    %60 = arith.addf %40, %59 : vector<64x128xf32>
    %61 = vector.extract_strided_slice %38 {offsets = [0, 32], sizes = [64, 32], strides = [1, 1]} : vector<64x384xbf16> to vector<64x32xbf16>
    %62 = vector.extract_strided_slice %38 {offsets = [0, 160], sizes = [64, 32], strides = [1, 1]} : vector<64x384xbf16> to vector<64x32xbf16>
    %63 = vector.extract_strided_slice %38 {offsets = [0, 288], sizes = [64, 32], strides = [1, 1]} : vector<64x384xbf16> to vector<64x32xbf16>
    %cst_27 = arith.constant dense<0.000000e+00> : vector<64x64xf32>
    %64 = tpu.matmul %61, %62, %cst_27 {dimension_numbers = #tpu.dot_dimension_numbers<[1], [1], [0], [0], [0, 0, 1, 0], [], []>} : vector<64x32xbf16>, vector<64x32xbf16>, vector<64x64xf32> -> vector<64x64xf32>
    %cst_28 = arith.constant dense<0xFF800000> : vector<64xf32>
    %65 = vector.multi_reduction <maximumf>, %64, %cst_28 [1] : vector<64x64xf32> to vector<64xf32>
    %66 = vector.shape_cast %65 : vector<64xf32> to vector<64x1xf32>
    %67 = vector.broadcast %66 : vector<64x1xf32> to vector<64x64xf32>
    %68 = arith.subf %64, %67 : vector<64x64xf32>
    %69 = math.exp %68 : vector<64x64xf32>
    %cst_29 = arith.constant dense<0.000000e+00> : vector<64xf32>
    %70 = vector.multi_reduction <add>, %69, %cst_29 [1] : vector<64x64xf32> to vector<64xf32>
    %71 = vector.shape_cast %70 : vector<64xf32> to vector<64x1xf32>
    %72 = tpu.reciprocal %71 {approx = true} : vector<64x1xf32> -> vector<64x1xf32>
    %73 = vector.broadcast %72 : vector<64x1xf32> to vector<64x64xf32>
    %74 = arith.mulf %69, %73 : vector<64x64xf32>
    %75 = vector.extract_strided_slice %39 {offsets = [32, 0], sizes = [32, 128], strides = [1, 1]} : vector<128x128xbf16> to vector<32x128xbf16>
    %cst_30 = arith.constant dense<0.000000e+00> : vector<64x128xf32>
    %76 = tpu.matmul %63, %75, %cst_30 {dimension_numbers = #tpu.dot_dimension_numbers<[1], [0], [0], [1], [0, 0, 1, 1], [], []>} : vector<64x32xbf16>, vector<32x128xbf16>, vector<64x128xf32> -> vector<64x128xf32>
    %77 = arith.truncf %76 : vector<64x128xf32> to vector<64x128xbf16>
    %78 = arith.truncf %74 : vector<64x64xf32> to vector<64x64xbf16>
    %cst_31 = arith.constant dense<0.000000e+00> : vector<64x128xf32>
    %79 = tpu.matmul %78, %77, %cst_31 {dimension_numbers = #tpu.dot_dimension_numbers<[1], [0], [0], [1], [0, 0, 1, 1], [], []>} : vector<64x64xbf16>, vector<64x128xbf16>, vector<64x128xf32> -> vector<64x128xf32>
    %80 = arith.addf %60, %79 : vector<64x128xf32>
    %c0_32 = arith.constant 0 : index
    %c0_33 = arith.constant 0 : index
    %81 = vector.load %arg6[%c0_32, %c0_33] : memref<1x128xf32, #tpu.memory_space<vmem>>, vector<1x128xf32>
    %82 = vector.broadcast %81 : vector<1x128xf32> to vector<64x128xf32>
    %83 = arith.addf %80, %82 : vector<64x128xf32>
    %84 = arith.addf %83, %1 : vector<64x128xf32>
    %c0_34 = arith.constant 0 : index
    %c0_35 = arith.constant 0 : index
    %c0_36 = arith.constant 0 : index
    %85 = vector.load %arg9[%c0_34, %c0_35, %c0_36] : memref<1x64x128xf32, #tpu.memory_space<vmem>>, vector<1x64x128xf32>
    %86 = vector.shape_cast %85 : vector<1x64x128xf32> to vector<64x128xf32>
    %87 = vector.shape_cast %84 : vector<64x128xf32> to vector<1x64x128xf32>
    tpu.vector_store %arg9[%c0_34, %c0_35, %c0_36], %87 {strides = array<i32>} : memref<1x64x128xf32, #tpu.memory_space<vmem>>, vector<1x64x128xf32>,
    return
  }
  func.func @transform_0(%arg0: i32) -> (i32, i32, i32) {
    %c0_i32 = arith.constant 0 : i32
    %c0_i32_0 = arith.constant 0 : i32
    %c0_i32_1 = arith.constant 0 : i32
    return %arg0, %c0_i32, %c0_i32_0 : i32, i32, i32
  }
  func.func @transform_1(%arg0: i32) -> (i32, i32) {
    %c0_i32 = arith.constant 0 : i32
    %c0_i32_0 = arith.constant 0 : i32
    %c0_i32_1 = arith.constant 0 : i32
    return %c0_i32, %c0_i32_0 : i32, i32
  }
  func.func @transform_2(%arg0: i32) -> (i32, i32) {
    %c0_i32 = arith.constant 0 : i32
    %c0_i32_0 = arith.constant 0 : i32
    %c0_i32_1 = arith.constant 0 : i32
    return %c0_i32, %c0_i32_0 : i32, i32
  }
  func.func @transform_3(%arg0: i32) -> (i32, i32) {
    %c0_i32 = arith.constant 0 : i32
    %c0_i32_0 = arith.constant 0 : i32
    %c0_i32_1 = arith.constant 0 : i32
    return %c0_i32, %c0_i32_0 : i32, i32
  }
  func.func @transform_4(%arg0: i32) -> (i32, i32) {
    %c0_i32 = arith.constant 0 : i32
    %c0_i32_0 = arith.constant 0 : i32
    %c0_i32_1 = arith.constant 0 : i32
    return %c0_i32, %c0_i32_0 : i32, i32
  }
  func.func @transform_5(%arg0: i32) -> (i32, i32) {
    %c0_i32 = arith.constant 0 : i32
    %c0_i32_0 = arith.constant 0 : i32
    %c0_i32_1 = arith.constant 0 : i32
    return %c0_i32, %c0_i32_0 : i32, i32
  }
  func.func @transform_6(%arg0: i32) -> (i32, i32) {
    %c0_i32 = arith.constant 0 : i32
    %c0_i32_0 = arith.constant 0 : i32
    %c0_i32_1 = arith.constant 0 : i32
    return %c0_i32, %c0_i32_0 : i32, i32
  }
  func.func @transform_7(%arg0: i32) -> (i32, i32) {
    %c0_i32 = arith.constant 0 : i32
    %c0_i32_0 = arith.constant 0 : i32
    %c0_i32_1 = arith.constant 0 : i32
    return %c0_i32, %c0_i32_0 : i32, i32
  }
  func.func @transform_8(%arg0: i32) -> (i32, i32, i32) {
    %c0_i32 = arith.constant 0 : i32
    %c0_i32_0 = arith.constant 0 : i32
    %c0_i32_1 = arith.constant 0 : i32
    return %arg0, %c0_i32, %c0_i32_0 : i32, i32, i32
  }
}

</mosaic_0001>

<llo_original>
// kernel: tpu_custom_call.1
$region0: #{tpu_custom_call.1}
  #allocation0 [shape = 'u32[]', space=smem, size = 0x4, offset = 0x4, fixed_abs, tag = 'smem constant byte address 0x4 - core index']
  #allocation1 [shape = 'u32[144,128]{1,0:T(1,128)}', space=vmem, size = 0x12000, scoped, tag = 'internal scratch']
  %s0 = inlined_call_operand.vmem [shape: f32[2,64,128], index: 0, kind: input, shape index: {}]
  %s1 = inlined_call_operand.vmem [shape: f32[1,128], index: 1, kind: input, shape index: {}]
  %s2 = inlined_call_operand.vmem [shape: f32[1,128], index: 2, kind: input, shape index: {}]
  %s3 = inlined_call_operand.hbm [shape: bf16[128,384], index: 3, kind: input, shape index: {}]
  %s4 = inlined_call_operand.hbm [shape: bf16[128,128], index: 4, kind: input, shape index: {}]
  %s5 = inlined_call_operand.vmem [shape: f32[1,128], index: 5, kind: input, shape index: {}]
  %s6 = inlined_call_operand.vmem [shape: f32[128,32], index: 6, kind: input, shape index: {}]
  %s7 = inlined_call_operand.vmem [shape: f32[32,128], index: 7, kind: input, shape index: {}]
  %s8 = inlined_call_operand.hbm [shape: f32[2,64,128], index: 8, kind: output, shape index: {}]
  %s9 = sld [smem:[#allocation0]]
  $region73: #{tpu_custom_call.1} parent=0
    _
  %s11 = ssub.s32 1, %s9
  %s12 = scalar_select 0, %s11, %s9
  $region1: #{tpu_custom_call.1} parent=0
    #allocation2 [shape = 'u8[98304]{0}', space=vmem, size = 0x18000, scoped, tag = 'input window, operand 3, single buffered']
    #allocation3 [shape = 's32[2]{0}', space=sflag, size = 0x8, scoped, tag = 'scoped memory for tpu_custom_call.1']
    #allocation4 [shape = 's32[2]{0}', space=sflag, size = 0x8, scoped, tag = 'scoped memory for tpu_custom_call.1']
    #allocation5 [shape = 'u8[32768]{0}', space=vmem, size = 0x8000, scoped, tag = 'input window, operand 4, single buffered']
    #allocation6 [shape = 's32[1]{0}', space=sflag, size = 0x4, scoped, tag = 'scoped memory for tpu_custom_call.1']
    #allocation7 [shape = 'u8[65536]{0}', space=vmem, size = 0x10000, scoped, tag = 'output window, operand 0']
    %13 = vsyncpa [#allocation3], 0
    %14 = vsyncpa [#allocation6], 0
    %15 = vsyncpa [#allocation4], 0
    %s16 = scalar_lea.sflag [#allocation4], 1
    %17 = vsyncpa %s16, 0
    loop: start=0, step=1, limit=4
    $region2: #{tpu_custom_call.1} parent=1 // loop_pre_header
      _
    $region3: #{tpu_custom_call.1} parent=1 // loop_header
      %s19 = sphi 0, %s23
      %p20 = scmp.ge.s32.totalorder %s19, 4
      %s29 = sphi 0, %s31
      %s32 = sphi 0, %s29
      %s33 = sphi 0, %s32
      %s49 = sphi 0, %s33
      %s53 = sphi 0, %s53
      %s55 = sphi 0, %s53
      %s56 = sphi 0, %s55
      %s70 = sphi 0, %s56
      %s74 = sphi 0, %s74
      %s76 = sphi 0, %s74
      %s77 = sphi 0, %s76
      %s91 = sphi 0, %s77
      %s95 = sphi 0, %s95
      %s97 = sphi 0, %s95
      %s98 = sphi 0, %s97
      %s112 = sphi 0, %s98
      %s116 = sphi 0, %s116
      %s118 = sphi 0, %s116
      %s119 = sphi 0, %s118
      %s133 = sphi 0, %s119
      %s137 = sphi 0, %s137
      %s139 = sphi 0, %s137
      %s140 = sphi 0, %s139
      %s154 = sphi 0, %s140
      %s158 = sphi 0, %s158
      %s160 = sphi 0, %s158
      %s161 = sphi 0, %s160
      %s175 = sphi 0, %s161
      %s179 = sphi 0, %s179
      %s181 = sphi 0, %s179
      %s182 = sphi 0, %s181
      %s196 = sphi 0, %s182
      %s202 = sphi 0, %s204
      %s205 = sphi 0, %s202
      %s206 = sphi 0, %s205
      %s222 = sphi 0, %s206
    $region4: #{tpu_custom_call.1} parent=1 // loop_header_branch
      %22 = sbr.rel (%p20) target = $region8
    $region5: #{tpu_custom_call.1} parent=1 // loop_body
      %s24 = ssub.s32 %s19, 1
      %s25 = ssub.s32 %s19, 2
      %s26 = sadd.s32 %s19, 1
      %s27 = ssub.s32 %s19, %s26
      %p28 = scmp.eq.s32.totalorder %s27, 0
      %s30 = sadd.s32 %s29, 1
      %s31 = scalar_select %p28, %s29, %s30
      %p34 = pneg %p28
      %p35 = scmp.eq.s32.totalorder %s19, 1
      %p36 = por %p34, %p35
      %p37 = scmp.ne.s32.totalorder %s29, %s32
      %p38 = scmp.eq.s32.totalorder %s19, 0
      %p39 = por %p37, %p38
      %p40 = scmp.ne.s32.totalorder %s29, %s32
      %p41 = scmp.eq.s32.totalorder %s24, 1
      %p42 = por %p40, %p41
      %p43 = scmp.ne.s32.totalorder %s32, %s33
      %p44 = scmp.eq.s32.totalorder %s24, 0
      %p45 = por %p43, %p44
      %p46 = scmp.ne.s32.totalorder %s32, %s33
      %p47 = scmp.eq.s32.totalorder %s25, 1
      %p48 = por %p46, %p47
      %p50 = scmp.ne.s32.totalorder %s33, %s49
      %p51 = scmp.eq.s32.totalorder %s25, 0
      %p52 = por %p50, %p51
      %s54 = sadd.s32 %s53, 1
      %p57 = scmp.eq.s32.totalorder %s19, 1
      %p58 = scmp.ne.s32.totalorder %s53, %s55
      %p59 = scmp.eq.s32.totalorder %s19, 0
      %p60 = por %p58, %p59
      %p61 = scmp.ne.s32.totalorder %s53, %s55
      %p62 = scmp.eq.s32.totalorder %s24, 1
      %p63 = por %p61, %p62
      %p64 = scmp.ne.s32.totalorder %s55, %s56
      %p65 = scmp.eq.s32.totalorder %s24, 0
      %p66 = por %p64, %p65
      %p67 = scmp.ne.s32.totalorder %s55, %s56
      %p68 = scmp.eq.s32.totalorder %s25, 1
      %p69 = por %p67, %p68
      %p71 = scmp.ne.s32.totalorder %s56, %s70
      %p72 = scmp.eq.s32.totalorder %s25, 0
      %p73 = por %p71, %p72
      %s75 = sadd.s32 %s74, 1
      %p78 = scmp.eq.s32.totalorder %s19, 1
      %p79 = scmp.ne.s32.totalorder %s74, %s76
      %p80 = scmp.eq.s32.totalorder %s19, 0
      %p81 = por %p79, %p80
      %p82 = scmp.ne.s32.totalorder %s74, %s76
      %p83 = scmp.eq.s32.totalorder %s24, 1
      %p84 = por %p82, %p83
      %p85 = scmp.ne.s32.totalorder %s76, %s77
      %p86 = scmp.eq.s32.totalorder %s24, 0
      %p87 = por %p85, %p86
      %p88 = scmp.ne.s32.totalorder %s76, %s77
      %p89 = scmp.eq.s32.totalorder %s25, 1
      %p90 = por %p88, %p89
      %p92 = scmp.ne.s32.totalorder %s77, %s91
      %p93 = scmp.eq.s32.totalorder %s25, 0
      %p94 = por %p92, %p93
      %s96 = sadd.s32 %s95, 1
      %p99 = scmp.eq.s32.totalorder %s19, 1
      %p100 = scmp.ne.s32.totalorder %s95, %s97
      %p101 = scmp.eq.s32.totalorder %s19, 0
      %p102 = por %p100, %p101
      %p103 = scmp.ne.s32.totalorder %s95, %s97
      %p104 = scmp.eq.s32.totalorder %s24, 1
      %p105 = por %p103, %p104
      %p106 = scmp.ne.s32.totalorder %s97, %s98
      %p107 = scmp.eq.s32.totalorder %s24, 0
      %p108 = por %p106, %p107
      %p109 = scmp.ne.s32.totalorder %s97, %s98
      %p110 = scmp.eq.s32.totalorder %s25, 1
      %p111 = por %p109, %p110
      %p113 = scmp.ne.s32.totalorder %s98, %s112
      %p114 = scmp.eq.s32.totalorder %s25, 0
      %p115 = por %p113, %p114
      %s117 = sadd.s32 %s116, 1
      %p120 = scmp.eq.s32.totalorder %s19, 1
      %p121 = scmp.ne.s32.totalorder %s116, %s118
      %p122 = scmp.eq.s32.totalorder %s19, 0
      %p123 = por %p121, %p122
      %p124 = scmp.ne.s32.totalorder %s116, %s118
      %p125 = scmp.eq.s32.totalorder %s24, 1
      %p126 = por %p124, %p125
      %p127 = scmp.ne.s32.totalorder %s118, %s119
      %p128 = scmp.eq.s32.totalorder %s24, 0
      %p129 = por %p127, %p128
      %p130 = scmp.ne.s32.totalorder %s118, %s119
      %p131 = scmp.eq.s32.totalorder %s25, 1
      %p132 = por %p130, %p131
      %p134 = scmp.ne.s32.totalorder %s119, %s133
      %p135 = scmp.eq.s32.totalorder %s25, 0
      %p136 = por %p134, %p135
      %s138 = sadd.s32 %s137, 1
      %p141 = scmp.eq.s32.totalorder %s19, 1
      %p142 = scmp.ne.s32.totalorder %s137, %s139
      %p143 = scmp.eq.s32.totalorder %s19, 0
      %p144 = por %p142, %p143
      %p145 = scmp.ne.s32.totalorder %s137, %s139
      %p146 = scmp.eq.s32.totalorder %s24, 1
      %p147 = por %p145, %p146
      %p148 = scmp.ne.s32.totalorder %s139, %s140
      %p149 = scmp.eq.s32.totalorder %s24, 0
      %p150 = por %p148, %p149
      %p151 = scmp.ne.s32.totalorder %s139, %s140
      %p152 = scmp.eq.s32.totalorder %s25, 1
      %p153 = por %p151, %p152
      %p155 = scmp.ne.s32.totalorder %s140, %s154
      %p156 = scmp.eq.s32.totalorder %s25, 0
      %p157 = por %p155, %p156
      %s159 = sadd.s32 %s158, 1
      %p162 = scmp.eq.s32.totalorder %s19, 1
      %p163 = scmp.ne.s32.totalorder %s158, %s160
      %p164 = scmp.eq.s32.totalorder %s19, 0
      %p165 = por %p163, %p164
      %p166 = scmp.ne.s32.totalorder %s158, %s160
      %p167 = scmp.eq.s32.totalorder %s24, 1
      %p168 = por %p166, %p167
      %p169 = scmp.ne.s32.totalorder %s160, %s161
      %p170 = scmp.eq.s32.totalorder %s24, 0
      %p171 = por %p169, %p170
      %p172 = scmp.ne.s32.totalorder %s160, %s161
      %p173 = scmp.eq.s32.totalorder %s25, 1
      %p174 = por %p172, %p173
      %p176 = scmp.ne.s32.totalorder %s161, %s175
      %p177 = scmp.eq.s32.totalorder %s25, 0
      %p178 = por %p176, %p177
      %s180 = sadd.s32 %s179, 1
      %p183 = scmp.eq.s32.totalorder %s19, 1
      %p184 = scmp.ne.s32.totalorder %s179, %s181
      %p185 = scmp.eq.s32.totalorder %s19, 0
      %p186 = por %p184, %p185
      %p187 = scmp.ne.s32.totalorder %s179, %s181
      %p188 = scmp.eq.s32.totalorder %s24, 1
      %p189 = por %p187, %p188
      %p190 = scmp.ne.s32.totalorder %s181, %s182
      %p191 = scmp.eq.s32.totalorder %s24, 0
      %p192 = por %p190, %p191
      %p193 = scmp.ne.s32.totalorder %s181, %s182
      %p194 = scmp.eq.s32.totalorder %s25, 1
      %p195 = por %p193, %p194
      %p197 = scmp.ne.s32.totalorder %s182, %s196
      %p198 = scmp.eq.s32.totalorder %s25, 0
      %p199 = por %p197, %p198
      %s200 = ssub.s32 %s19, %s26
      %p201 = scmp.eq.s32.totalorder %s200, 0
      %s203 = sadd.s32 %s202, 1
      %s204 = scalar_select %p201, %s202, %s203
      %p207 = pneg %p201
      %p208 = scmp.eq.s32.totalorder %s19, 1
      %p209 = por %p207, %p208
      %p210 = scmp.ne.s32.totalorder %s202, %s205
      %p211 = scmp.eq.s32.totalorder %s19, 0
      %p212 = por %p210, %p211
      %p213 = scmp.ne.s32.totalorder %s202, %s205
      %p214 = scmp.eq.s32.totalorder %s24, 1
      %p215 = por %p213, %p214
      %p216 = scmp.ne.s32.totalorder %s205, %s206
      %p217 = scmp.eq.s32.totalorder %s24, 0
      %p218 = por %p216, %p217
      %p219 = scmp.ne.s32.totalorder %s205, %s206
      %p220 = scmp.eq.s32.totalorder %s25, 1
      %p221 = por %p219, %p220
      %p223 = scmp.ne.s32.totalorder %s206, %s222
      %p224 = scmp.eq.s32.totalorder %s25, 0
      %p225 = por %p223, %p224
      %p226 = scmp.le.s32.totalorder 1, %s19
      %p227 = scmp.lt.s32.totalorder %s19, 3
      %p228 = pnand %p226, %p227
      %p229 = pneg %p228
      // Predicated region
      $region9: #{tpu_custom_call.1} parent=5 // pred_check
        _
      $region10: #{tpu_custom_call.1} parent=5 // pred_check_branch
        %231 = sbr.rel (%p228) target = $region12
      $region11: #{tpu_custom_call.1} parent=5 // pred_region
        %s232 = ssub.s32 %s19, 1
        // Predicated region
        $region13: #{tpu_custom_call.1} parent=11 // pred_check
          %p233 = pneg %p66
        $region14: #{tpu_custom_call.1} parent=11 // pred_check_branch
          %235 = sbr.rel (%p233) target = $region16
        $region15: #{tpu_custom_call.1} parent=11 // pred_region
          _
        $region16: #{tpu_custom_call.1} parent=11 // pred_fallthru
          _
        // Predicated region
        $region17: #{tpu_custom_call.1} parent=11 // pred_check
          %p236 = pneg %p87
        $region18: #{tpu_custom_call.1} parent=11 // pred_check_branch
          %238 = sbr.rel (%p236) target = $region20
        $region19: #{tpu_custom_call.1} parent=11 // pred_region
          _
        $region20: #{tpu_custom_call.1} parent=11 // pred_fallthru
          _
        // Predicated region
        $region21: #{tpu_custom_call.1} parent=11 // pred_check
          %p239 = pneg %p108
        $region22: #{tpu_custom_call.1} parent=11 // pred_check_branch
          %241 = sbr.rel (%p239) target = $region24
        $region23: #{tpu_custom_call.1} parent=11 // pred_region
          %s243 = ssub.s32 3072, 3072
          %244 = vsyncadd [#allocation3], %s243
          %s245 = sshll.u32 [#allocation2], 4
          %s246 = int_to_ptr.vmem [resolvable:$true] %s245
          %251 = dma.hbm_to_vmem [thread:$0]  %s3, 3072, %s246, [#allocation3], 192, 192, 12
        $region24: #{tpu_custom_call.1} parent=11 // pred_fallthru
          _
        // Predicated region
        $region25: #{tpu_custom_call.1} parent=11 // pred_check
          %p252 = pneg %p129
        $region26: #{tpu_custom_call.1} parent=11 // pred_check_branch
          %254 = sbr.rel (%p252) target = $region28
        $region27: #{tpu_custom_call.1} parent=11 // pred_region
          %s256 = ssub.s32 1024, 1024
          %257 = vsyncadd [#allocation6], %s256
          %s258 = sshll.u32 [#allocation5], 4
          %s259 = int_to_ptr.vmem [resolvable:$true] %s258
          %264 = dma.hbm_to_vmem [thread:$0]  %s4, 1024, %s259, [#allocation6], 64, 64, 4
        $region28: #{tpu_custom_call.1} parent=11 // pred_fallthru
          _
        // Predicated region
        $region29: #{tpu_custom_call.1} parent=11 // pred_check
          %p265 = pneg %p150
        $region30: #{tpu_custom_call.1} parent=11 // pred_check_branch
          %267 = sbr.rel (%p265) target = $region32
        $region31: #{tpu_custom_call.1} parent=11 // pred_region
          _
        $region32: #{tpu_custom_call.1} parent=11 // pred_fallthru
          _
        // Predicated region
        $region33: #{tpu_custom_call.1} parent=11 // pred_check
          %p268 = pneg %p171
        $region34: #{tpu_custom_call.1} parent=11 // pred_check_branch
          %270 = sbr.rel (%p268) target = $region36
        $region35: #{tpu_custom_call.1} parent=11 // pred_region
          _
        $region36: #{tpu_custom_call.1} parent=11 // pred_fallthru
          _
        // Predicated region
        $region37: #{tpu_custom_call.1} parent=11 // pred_check
          %p271 = pneg %p192
        $region38: #{tpu_custom_call.1} parent=11 // pred_check_branch
          %273 = sbr.rel (%p271) target = $region40
        $region39: #{tpu_custom_call.1} parent=11 // pred_region
          _
        $region40: #{tpu_custom_call.1} parent=11 // pred_fallthru
          _
      $region12: #{tpu_custom_call.1} parent=5 // pred_fallthru
        _
      %p274 = scmp.lt.s32.totalorder %s19, 2
      // Predicated region
      $region41: #{tpu_custom_call.1} parent=5 // pred_check
        %p275 = pneg %p274
      $region42: #{tpu_custom_call.1} parent=5 // pred_check_branch
        %277 = sbr.rel (%p275) target = $region44
      $region43: #{tpu_custom_call.1} parent=5 // pred_region
        // Predicated region
        $region45: #{tpu_custom_call.1} parent=43 // pred_check
          %p278 = pneg %p39
        $region46: #{tpu_custom_call.1} parent=43 // pred_check_branch
          %280 = sbr.rel (%p278) target = $region48
        $region47: #{tpu_custom_call.1} parent=43 // pred_region
          %p281 = scmp.lt.s32.totalorder %s19, 1
          %s282 = scalar_select %p281, %s19, 1
          %s283 = smul.addr %s282, 8
          %s284 = smul.addr %s283, 8
          %s285 = scalar_lea.vmem %s0, %s284
        $region48: #{tpu_custom_call.1} parent=43 // pred_fallthru
          _
      $region44: #{tpu_custom_call.1} parent=5 // pred_fallthru
        _
      %p286 = scmp.le.s32.totalorder 1, %s19
      %p287 = scmp.lt.s32.totalorder %s19, 3
      %p288 = pnand %p286, %p287
      %p289 = pneg %p288
      // Predicated region
      $region49: #{tpu_custom_call.1} parent=5 // pred_check
        _
      $region50: #{tpu_custom_call.1} parent=5 // pred_check_branch
        %291 = sbr.rel (%p288) target = $region52
      $region51: #{tpu_custom_call.1} parent=5 // pred_region
        %s292 = ssub.s32 %s19, 1
        // Predicated region
        $region53: #{tpu_custom_call.1} parent=51 // pred_check
          %p293 = pneg %p108
        $region54: #{tpu_custom_call.1} parent=51 // pred_check_branch
          %295 = sbr.rel (%p293) target = $region56
        $region55: #{tpu_custom_call.1} parent=51 // pred_region
          %296 = dma.done [#allocation3], 3072
        $region56: #{tpu_custom_call.1} parent=51 // pred_fallthru
          _
        // Predicated region
        $region57: #{tpu_custom_call.1} parent=51 // pred_check
          %p297 = pneg %p129
        $region58: #{tpu_custom_call.1} parent=51 // pred_check_branch
          %299 = sbr.rel (%p297) target = $region60
        $region59: #{tpu_custom_call.1} parent=51 // pred_region
          %300 = dma.done [#allocation6], 1024
        $region60: #{tpu_custom_call.1} parent=51 // pred_fallthru
          _
        %p301 = scmp.lt.s32.totalorder %s24, 1
        %s302 = scalar_select %p301, %s24, 1
        %s303 = smul.addr %s302, 8
        %s304 = smul.addr %s303, 8
        %s305 = scalar_lea.vmem %s0, %s304
        %p306 = pneg %p45
        %p307 = pneg %p42
        %p308 = pneg %p66
        %p309 = pneg %p63
        %p310 = pneg %p87
        %p311 = pneg %p84
        %p312 = pneg %p108
        %p313 = pneg %p105
        %p314 = pneg %p129
        %p315 = pneg %p126
        %p316 = pneg %p150
        %p317 = pneg %p147
        %p318 = pneg %p171
        %p319 = pneg %p168
        %p320 = pneg %p192
        %p321 = pneg %p189
        %p322 = pneg %p218
        %p323 = pneg %p215
        %s324 = sand.u32 %s205, 1
        %s325 = scalar_lea.sflag [#allocation4], %s324
        %s326 = sand.u32 %s205, 1
        %s327 = smul.addr %s326, 64
        %s328 = scalar_lea.vmem [#allocation7], %s327
        %p329 = scmp.lt.s32.totalorder %s24, 1
        %s330 = scalar_select %p329, %s24, 1
        %s331 = smul.addr %s330, 8
        %s332 = smul.addr %s331, 8
        %s333 = scalar_lea.vmem %s0, %s332
        %v335 = vld [vmem:[%s333] sm:$0xff]
        %v336 = vld [vmem:[%s333 + $0x8] sm:$0xff]
        %v337 = vld [vmem:[%s333 + $0x10] sm:$0xff]
        %v338 = vld [vmem:[%s333 + $0x18] sm:$0xff]
        %v339 = vld [vmem:[%s333 + $0x20] sm:$0xff]
        %v340 = vld [vmem:[%s333 + $0x28] sm:$0xff]
        %v341 = vld [vmem:[%s333 + $0x30] sm:$0xff]
        %v342 = vld [vmem:[%s333 + $0x38] sm:$0xff]
        %v343 = vadd.f32 %v335, %v336
        %v344 = vadd.f32 %v343, %v337
        %v345 = vadd.f32 %v344, %v338
        %v346 = vadd.f32 %v345, %v339
        %v347 = vadd.f32 %v346, %v340
        %v348 = vadd.f32 %v347, %v341
        %v349 = vadd.f32 %v348, %v342
        %v350 = vrot.slane %v349, 4
        %v351 = vadd.f32 %v349, %v350
        %v352 = vrot.slane %v351, 2
        %v353 = vadd.f32 %v351, %v352
        %v354 = vrot.slane %v353, 1
        %v355 = vadd.f32 %v353, %v354
        %v356 = vmul.f32 %v335, %v335
        %v357 = vmul.f32 %v336, %v336
        %v358 = vmul.f32 %v337, %v337
        %v359 = vmul.f32 %v338, %v338
        %v360 = vmul.f32 %v339, %v339
        %v361 = vmul.f32 %v340, %v340
        %v362 = vmul.f32 %v341, %v341
        %v363 = vmul.f32 %v342, %v342
        %v364 = vadd.f32 %v356, %v357
        %v365 = vadd.f32 %v364, %v358
        %v366 = vadd.f32 %v365, %v359
        %v367 = vadd.f32 %v366, %v360
        %v368 = vadd.f32 %v367, %v361
        %v369 = vadd.f32 %v368, %v362
        %v370 = vadd.f32 %v369, %v363
        %v371 = vrot.slane %v370, 4
        %v372 = vadd.f32 %v370, %v371
        %v373 = vrot.slane %v372, 2
        %v374 = vadd.f32 %v372, %v373
        %v375 = vrot.slane %v374, 1
        %v376 = vadd.f32 %v374, %v375
        %vm377 = vcmask 1040384
        %v378 = vsel %vm377, %v355, %v376
        %v379 = vld [vmem:[%s6] sm:$0xff]
        %v380 = vld [vmem:[%s6 + $0x8] sm:$0xff]
        %v381 = vld [vmem:[%s6 + $0x10] sm:$0xff]
        %v382 = vld [vmem:[%s6 + $0x18] sm:$0xff]
        %v383 = vld [vmem:[%s6 + $0x20] sm:$0xff]
        %v384 = vld [vmem:[%s6 + $0x28] sm:$0xff]
        %v385 = vld [vmem:[%s6 + $0x30] sm:$0xff]
        %v386 = vld [vmem:[%s6 + $0x38] sm:$0xff]
        %v387 = vld [vmem:[%s6 + $0x40] sm:$0xff]
        %v388 = vld [vmem:[%s6 + $0x48] sm:$0xff]
        %v389 = vld [vmem:[%s6 + $0x50] sm:$0xff]
        %v390 = vld [vmem:[%s6 + $0x58] sm:$0xff]
        %v391 = vld [vmem:[%s6 + $0x60] sm:$0xff]
        %v392 = vld [vmem:[%s6 + $0x68] sm:$0xff]
        %v393 = vld [vmem:[%s6 + $0x70] sm:$0xff]
        %v394 = vld [vmem:[%s6 + $0x78] sm:$0xff]
        %395 = vmatprep.subr.mxu0 0.0
        %396 = vmatpush1.msra.mxu0 %v394
        %397 = vmatprep.subr.mxu0 0.0
        %398 = vmatpush1.msra.mxu0 %v393
        %399 = vmatprep.subr.mxu0 0.0
        %400 = vmatpush1.msra.mxu0 %v392
        %401 = vmatprep.subr.mxu0 0.0
        %402 = vmatpush1.msra.mxu0 %v391
        %403 = vmatprep.subr.mxu0 0.0
        %404 = vmatpush1.msra.mxu0 %v390
        %405 = vmatprep.subr.mxu0 0.0
        %406 = vmatpush1.msra.mxu0 %v389
        %407 = vmatprep.subr.mxu0 0.0
        %408 = vmatpush1.msra.mxu0 %v388
        %409 = vmatprep.subr.mxu0 0.0
        %410 = vmatpush1.msra.mxu0 %v387
        %411 = vmatprep.subr.mxu0 0.0
        %412 = vmatpush1.msra.mxu0 %v386
        %413 = vmatprep.subr.mxu0 0.0
        %414 = vmatpush1.msra.mxu0 %v385
        %415 = vmatprep.subr.mxu0 0.0
        %416 = vmatpush1.msra.mxu0 %v384
        %417 = vmatprep.subr.mxu0 0.0
        %418 = vmatpush1.msra.mxu0 %v383
        %419 = vmatprep.subr.mxu0 0.0
        %420 = vmatpush1.msra.mxu0 %v382
        %421 = vmatprep.subr.mxu0 0.0
        %422 = vmatpush1.msra.mxu0 %v381
        %423 = vmatprep.subr.mxu0 0.0
        %424 = vmatpush1.msra.mxu0 %v380
        %425 = vmatprep.subr.mxu0 0.0
        %426 = vmatpush1.msra.mxu0 %v379
        %427 = vmatprep.subr.mxu0 0.0
        %428 = vmatpush2.msra.mxu0 0.0
        %429 = vmatprep.subr.mxu0 0.0
        %430 = vmatpush2.msra.mxu0 0.0
        %431 = vmatprep.subr.mxu0 0.0
        %432 = vmatpush2.msra.mxu0 0.0
        %433 = vmatprep.subr.mxu0 0.0
        %434 = vmatpush2.msra.mxu0 0.0
        %435 = vmatprep.subr.mxu0 0.0
        %436 = vmatpush2.msra.mxu0 0.0
        %437 = vmatprep.subr.mxu0 0.0
        %438 = vmatpush2.msra.mxu0 0.0
        %439 = vmatprep.subr.mxu0 0.0
        %440 = vmatpush2.msra.mxu0 0.0
        %441 = vmatprep.subr.mxu0 0.0
        %442 = vmatpush2.msra.mxu0 0.0
        %443 = vmatprep.subr.mxu0 0.0
        %444 = vmatpush2.msra.mxu0 0.0
        %445 = vmatprep.subr.mxu0 0.0
        %446 = vmatpush2.msra.mxu0 0.0
        %447 = vmatprep.subr.mxu0 0.0
        %448 = vmatpush2.msra.mxu0 0.0
        %449 = vmatprep.subr.mxu0 0.0
        %450 = vmatpush2.msra.mxu0 0.0
        %451 = vmatprep.subr.mxu0 0.0
        %452 = vmatpush2.msra.mxu0 0.0
        %453 = vmatprep.subr.mxu0 0.0
        %454 = vmatpush2.msra.mxu0 0.0
        %455 = vmatprep.subr.mxu0 0.0
        %456 = vmatpush2.msra.mxu0 0.0
        %457 = vmatprep.subr.mxu0 0.0
        %458 = vmatpush2.msra.mxu0 0.0
        %459 = vmatprep.mubr.f32.mxu0 0.0
        %460 = vmatmul.mubr.f32.gmra.mxu0 %v378
        %v461 = vpop.f32.mrf.mxu0
        %v462 = vadd.f32 0.0, %v461
        %v463 = vpop.f32.mrf.mxu0
        %464 = vdwg.mxu0
        %v465 = vrcp.pop 128.0
        %v466 = vmul.f32 %v462, %v465
        %v467 = vmul.f32 %v466, %v466
        %v469 = vrot.slane %v467, 7
        %v471 = vsub.f32 %v466, %v469
        %v472 = vadd.f32 %v471, 1e-05
        %v473 = vrsqrt.pop %v472
        %v474 = vsel %vm377, %v466, %v473
        %v475 = vld [vmem:[%s7] sm:$0xff]
        %v476 = vld [vmem:[%s7 + $0x8] sm:$0xff]
        %v477 = vld [vmem:[%s7 + $0x10] sm:$0xff]
        %v478 = vld [vmem:[%s7 + $0x18] sm:$0xff]
        %vm479 = vcmask 261120
        %v481 = vsel %vm479, %v474, 0
        %483 = vmatprep.subr.mxu0 0.0
        %484 = vmatpush1.msra.mxu0 0.0
        %485 = vmatprep.subr.mxu0 0.0
        %486 = vmatpush1.msra.mxu0 0.0
        %487 = vmatprep.subr.mxu0 0.0
        %488 = vmatpush1.msra.mxu0 0.0
        %489 = vmatprep.subr.mxu0 0.0
        %490 = vmatpush1.msra.mxu0 0.0
        %491 = vmatprep.subr.mxu0 0.0
        %492 = vmatpush1.msra.mxu0 0.0
        %493 = vmatprep.subr.mxu0 0.0
        %494 = vmatpush1.msra.mxu0 0.0
        %495 = vmatprep.subr.mxu0 0.0
        %496 = vmatpush1.msra.mxu0 0.0
        %497 = vmatprep.subr.mxu0 0.0
        %498 = vmatpush1.msra.mxu0 0.0
        %499 = vmatprep.subr.mxu0 0.0
        %500 = vmatpush1.msra.mxu0 0.0
        %501 = vmatprep.subr.mxu0 0.0
        %502 = vmatpush1.msra.mxu0 0.0
        %503 = vmatprep.subr.mxu0 0.0
        %504 = vmatpush1.msra.mxu0 0.0
        %505 = vmatprep.subr.mxu0 0.0
        %506 = vmatpush1.msra.mxu0 0.0
        %507 = vmatprep.subr.mxu0 0.0
        %508 = vmatpush1.msra.mxu0 %v478
        %509 = vmatprep.subr.mxu0 0.0
        %510 = vmatpush1.msra.mxu0 %v477
        %511 = vmatprep.subr.mxu0 0.0
        %512 = vmatpush1.msra.mxu0 %v476
        %513 = vmatprep.subr.mxu0 0.0
        %514 = vmatpush1.msra.mxu0 %v475
        %515 = vmatprep.subr.mxu0 0.0
        %516 = vmatpush2.msra.mxu0 0.0
        %517 = vmatprep.subr.mxu0 0.0
        %518 = vmatpush2.msra.mxu0 0.0
        %519 = vmatprep.subr.mxu0 0.0
        %520 = vmatpush2.msra.mxu0 0.0
        %521 = vmatprep.subr.mxu0 0.0
        %522 = vmatpush2.msra.mxu0 0.0
        %523 = vmatprep.subr.mxu0 0.0
        %524 = vmatpush2.msra.mxu0 0.0
        %525 = vmatprep.subr.mxu0 0.0
        %526 = vmatpush2.msra.mxu0 0.0
        %527 = vmatprep.subr.mxu0 0.0
        %528 = vmatpush2.msra.mxu0 0.0
        %529 = vmatprep.subr.mxu0 0.0
        %530 = vmatpush2.msra.mxu0 0.0
        %531 = vmatprep.subr.mxu0 0.0
        %532 = vmatpush2.msra.mxu0 0.0
        %533 = vmatprep.subr.mxu0 0.0
        %534 = vmatpush2.msra.mxu0 0.0
        %535 = vmatprep.subr.mxu0 0.0
        %536 = vmatpush2.msra.mxu0 0.0
        %537 = vmatprep.subr.mxu0 0.0
        %538 = vmatpush2.msra.mxu0 0.0
        %539 = vmatprep.subr.mxu0 0.0
        %540 = vmatpush2.msra.mxu0 0.0
        %541 = vmatprep.subr.mxu0 0.0
        %542 = vmatpush2.msra.mxu0 0.0
        %543 = vmatprep.subr.mxu0 0.0
        %544 = vmatpush2.msra.mxu0 0.0
        %545 = vmatprep.subr.mxu0 0.0
        %546 = vmatpush2.msra.mxu0 0.0
        %547 = vmatprep.mubr.f32.mxu0 0.0
        %548 = vmatmul.mubr.f32.gmra.mxu0 %v481
        %v549 = vpop.f32.mrf.mxu0
        %v550 = vadd.f32 0.0, %v549
        %v551 = vpop.f32.mrf.mxu0
        %552 = vdwg.mxu0
        %v553 = vld [vmem:[%s1] sm:$0x1]
        %v555 = vlaneseq
        %v556 = vshrl.u32 %v555, 7
        %v557 = vsub.s32 0, %v556
        %v558 = vrot.slane %v553, %v557
        %v560 = vmul.f32 %v550, %v558
        %v561 = vld [vmem:[%s2] sm:$0x1]
        %v563 = vrot.slane %v560, 1
        %v565 = vmul.f32 %v550, %v563
        %v566 = vsub.f32 %v561, %v565
        %v567 = vlaneseq
        %v568 = vshrl.u32 %v567, 7
        %v569 = vsub.s32 1, %v568
        %v570 = vrot.slane %v560, %v569
        %v571 = vmul.f32 %v335, %v570
        %v572 = vmul.f32 %v336, %v570
        %v573 = vmul.f32 %v337, %v570
        %v574 = vmul.f32 %v338, %v570
        %v575 = vmul.f32 %v339, %v570
        %v576 = vmul.f32 %v340, %v570
        %v577 = vmul.f32 %v341, %v570
        %v578 = vmul.f32 %v342, %v570
        %v580 = vlaneseq
        %v581 = vshrl.u32 %v580, 7
        %v582 = vsub.s32 0, %v581
        %v583 = vrot.slane %v566, %v582
        %v585 = vadd.f32 %v571, %v583
        %v586 = vadd.f32 %v572, %v583
        %v587 = vadd.f32 %v573, %v583
        %v588 = vadd.f32 %v574, %v583
        %v589 = vadd.f32 %v575, %v583
        %v590 = vadd.f32 %v576, %v583
        %v591 = vadd.f32 %v577, %v583
        %v592 = vadd.f32 %v578, %v583
        %v593 = vpack.c.bf16 %v586, %v585
        %v594 = vpack.c.bf16 %v588, %v587
        %v595 = vpack.c.bf16 %v590, %v589
        %v596 = vpack.c.bf16 %v592, %v591
        %v597 = vld [vmem:[#allocation2] sm:$0xff]
        %v598 = vld [vmem:[#allocation2 + $0x8] sm:$0xf]
        %v599 = vld [vmem:[#allocation2 + $0xc] sm:$0xff]
        %v600 = vld [vmem:[#allocation2 + $0x14] sm:$0xf]
        %v601 = vld [vmem:[#allocation2 + $0x18] sm:$0xff]
        %v602 = vld [vmem:[#allocation2 + $0x20] sm:$0xf]
        %v603 = vld [vmem:[#allocation2 + $0x24] sm:$0xff]
        %v604 = vld [vmem:[#allocation2 + $0x2c] sm:$0xf]
        %v605 = vld [vmem:[#allocation2 + $0x30] sm:$0xff]
        %v606 = vld [vmem:[#allocation2 + $0x38] sm:$0xf]
        %v607 = vld [vmem:[#allocation2 + $0x3c] sm:$0xff]
        %v608 = vld [vmem:[#allocation2 + $0x44] sm:$0xf]
        %v609 = vld [vmem:[#allocation2 + $0x48] sm:$0xff]
        %v610 = vld [vmem:[#allocation2 + $0x50] sm:$0xf]
        %v611 = vld [vmem:[#allocation2 + $0x54] sm:$0xff]
        %v612 = vld [vmem:[#allocation2 + $0x5c] sm:$0xf]
        %v613 = vld [vmem:[#allocation2 + $0x60] sm:$0xff]
        %v614 = vld [vmem:[#allocation2 + $0x68] sm:$0xf]
        %v615 = vld [vmem:[#allocation2 + $0x6c] sm:$0xff]
        %v616 = vld [vmem:[#allocation2 + $0x74] sm:$0xf]
        %v617 = vld [vmem:[#allocation2 + $0x78] sm:$0xff]
        %v618 = vld [vmem:[#allocation2 + $0x80] sm:$0xf]
        %v619 = vld [vmem:[#allocation2 + $0x84] sm:$0xff]
        %v620 = vld [vmem:[#allocation2 + $0x8c] sm:$0xf]
        %v621 = vld [vmem:[#allocation2 + $0x90] sm:$0xff]
        %v622 = vld [vmem:[#allocation2 + $0x98] sm:$0xf]
        %v623 = vld [vmem:[#allocation2 + $0x9c] sm:$0xff]
        %v624 = vld [vmem:[#allocation2 + $0xa4] sm:$0xf]
        %v625 = vld [vmem:[#allocation2 + $0xa8] sm:$0xff]
        %v626 = vld [vmem:[#allocation2 + $0xb0] sm:$0xf]
        %v627 = vld [vmem:[#allocation2 + $0xb4] sm:$0xff]
        %v628 = vld [vmem:[#allocation2 + $0xbc] sm:$0xf]
        %v661 = vunpack.c.l.b16 %v597
        %v662 = vunpack.c.h.b16 %v597
        %v663 = vunpack.c.l.b16 %v598
        %v664 = vunpack.c.l.b16 %v599
        %v665 = vunpack.c.h.b16 %v599
        %v666 = vunpack.c.l.b16 %v600
        %v667 = vunpack.c.l.b16 %v601
        %v668 = vunpack.c.h.b16 %v601
        %v669 = vunpack.c.l.b16 %v602
        %v670 = vunpack.c.l.b16 %v603
        %v671 = vunpack.c.h.b16 %v603
        %v672 = vunpack.c.l.b16 %v604
        %v673 = vunpack.c.l.b16 %v605
        %v674 = vunpack.c.h.b16 %v605
        %v675 = vunpack.c.l.b16 %v606
        %v676 = vunpack.c.l.b16 %v607
        %v677 = vunpack.c.h.b16 %v607
        %v678 = vunpack.c.l.b16 %v608
        %v679 = vunpack.c.l.b16 %v609
        %v680 = vunpack.c.h.b16 %v609
        %v681 = vunpack.c.l.b16 %v610
        %v682 = vunpack.c.l.b16 %v611
        %v683 = vunpack.c.h.b16 %v611
        %v684 = vunpack.c.l.b16 %v612
        %v685 = vunpack.c.l.b16 %v613
        %v686 = vunpack.c.h.b16 %v613
        %v687 = vunpack.c.l.b16 %v614
        %v688 = vunpack.c.l.b16 %v615
        %v689 = vunpack.c.h.b16 %v615
        %v690 = vunpack.c.l.b16 %v616
        %v691 = vunpack.c.l.b16 %v617
        %v692 = vunpack.c.h.b16 %v617
        %v693 = vunpack.c.l.b16 %v618
        %v694 = vunpack.c.l.b16 %v619
        %v695 = vunpack.c.h.b16 %v619
        %v696 = vunpack.c.l.b16 %v620
        %v697 = vunpack.c.l.b16 %v621
        %v698 = vunpack.c.h.b16 %v621
        %v699 = vunpack.c.l.b16 %v622
        %v700 = vunpack.c.l.b16 %v623
        %v701 = vunpack.c.h.b16 %v623
        %v702 = vunpack.c.l.b16 %v624
        %v703 = vunpack.c.l.b16 %v625
        %v704 = vunpack.c.h.b16 %v625
        %v705 = vunpack.c.l.b16 %v626
        %v706 = vunpack.c.l.b16 %v627
        %v707 = vunpack.c.h.b16 %v627
        %v708 = vunpack.c.l.b16 %v628
        %v709 = vpack.c.b16 %v664, %v661
        %v710 = vpack.c.b16 %v665, %v662
        %v711 = vpack.c.b16 %v666, %v663
        %v712 = vpack.c.b16 %v670, %v667
        %v713 = vpack.c.b16 %v671, %v668
        %v714 = vpack.c.b16 %v672, %v669
        %v715 = vpack.c.b16 %v676, %v673
        %v716 = vpack.c.b16 %v677, %v674
        %v717 = vpack.c.b16 %v678, %v675
        %v718 = vpack.c.b16 %v682, %v679
        %v719 = vpack.c.b16 %v683, %v680
        %v720 = vpack.c.b16 %v684, %v681
        %v721 = vpack.c.b16 %v688, %v685
        %v722 = vpack.c.b16 %v689, %v686
        %v723 = vpack.c.b16 %v690, %v687
        %v724 = vpack.c.b16 %v694, %v691
        %v725 = vpack.c.b16 %v695, %v692
        %v726 = vpack.c.b16 %v696, %v693
        %v727 = vpack.c.b16 %v700, %v697
        %v728 = vpack.c.b16 %v701, %v698
        %v729 = vpack.c.b16 %v702, %v699
        %v730 = vpack.c.b16 %v706, %v703
        %v731 = vpack.c.b16 %v707, %v704
        %v732 = vpack.c.b16 %v708, %v705
        %757 = vmatprep.subr.bf16.mxu0 %v731
        %758 = vmatpush1.bf16.msra.mxu0 %v730
        %759 = vmatprep.subr.bf16.mxu0 %v728
        %760 = vmatpush1.bf16.msra.mxu0 %v727
        %761 = vmatprep.subr.bf16.mxu0 %v725
        %762 = vmatpush1.bf16.msra.mxu0 %v724
        %763 = vmatprep.subr.bf16.mxu0 %v722
        %764 = vmatpush1.bf16.msra.mxu0 %v721
        %765 = vmatprep.subr.bf16.mxu0 %v719
        %766 = vmatpush1.bf16.msra.mxu0 %v718
        %767 = vmatprep.subr.bf16.mxu0 %v716
        %768 = vmatpush1.bf16.msra.mxu0 %v715
        %769 = vmatprep.subr.bf16.mxu0 %v713
        %770 = vmatpush1.bf16.msra.mxu0 %v712
        %771 = vmatprep.subr.bf16.mxu0 %v710
        %772 = vmatpush1.bf16.msra.mxu0 %v709
        %773 = vmatprep.subr.bf16.mxu0 0
        %774 = vmatpush2.bf16.msra.mxu0 0
        %775 = vmatprep.subr.bf16.mxu0 0
        %776 = vmatpush2.bf16.msra.mxu0 0
        %777 = vmatprep.subr.bf16.mxu0 0
        %778 = vmatpush2.bf16.msra.mxu0 0
        %779 = vmatprep.subr.bf16.mxu0 0
        %780 = vmatpush2.bf16.msra.mxu0 0
        %781 = vmatprep.subr.bf16.mxu0 0
        %782 = vmatpush2.bf16.msra.mxu0 0
        %783 = vmatprep.subr.bf16.mxu0 0
        %784 = vmatpush2.bf16.msra.mxu0 0
        %785 = vmatprep.subr.bf16.mxu0 0
        %786 = vmatpush2.bf16.msra.mxu0 0
        %787 = vmatprep.subr.bf16.mxu0 0
        %788 = vmatpush2.bf16.msra.mxu0 0
        %789 = vmatprep.mubr.bf16.mxu0 0
        %790 = vmatmul.mubr.bf16.gmra.mxu0 %v593
        %v791 = vpop.f32.mrf.mxu0
        %v792 = vadd.f32 0.0, %v791
        %v793 = vpop.f32.mrf.mxu0
        %v794 = vadd.f32 0.0, %v793
        %v795 = vpop.f32.mrf.mxu0
        %v796 = vadd.f32 0.0, %v795
        %v797 = vpop.f32.mrf.mxu0
        %v798 = vadd.f32 0.0, %v797
        %799 = vmatprep.mubr.bf16.mxu0 0
        %800 = vmatmul.mubr.bf16.gmra.mxu0 %v594
        %v801 = vpop.f32.mrf.mxu0
        %v802 = vadd.f32 0.0, %v801
        %v803 = vpop.f32.mrf.mxu0
        %v804 = vadd.f32 0.0, %v803
        %v805 = vpop.f32.mrf.mxu0
        %v806 = vadd.f32 0.0, %v805
        %v807 = vpop.f32.mrf.mxu0
        %v808 = vadd.f32 0.0, %v807
        %809 = vmatprep.mubr.bf16.mxu0 0
        %810 = vmatmul.mubr.bf16.gmra.mxu0 %v595
        %v811 = vpop.f32.mrf.mxu0
        %v812 = vadd.f32 0.0, %v811
        %v813 = vpop.f32.mrf.mxu0
        %v814 = vadd.f32 0.0, %v813
        %v815 = vpop.f32.mrf.mxu0
        %v816 = vadd.f32 0.0, %v815
        %v817 = vpop.f32.mrf.mxu0
        %v818 = vadd.f32 0.0, %v817
        %819 = vmatprep.mubr.bf16.mxu0 0
        %820 = vmatmul.mubr.bf16.gmra.mxu0 %v596
        %v821 = vpop.f32.mrf.mxu0
        %v822 = vadd.f32 0.0, %v821
        %v823 = vpop.f32.mrf.mxu0
        %v824 = vadd.f32 0.0, %v823
        %v825 = vpop.f32.mrf.mxu0
        %v826 = vadd.f32 0.0, %v825
        %v827 = vpop.f32.mrf.mxu0
        %v828 = vadd.f32 0.0, %v827
        %829 = vdwg.mxu0
        %830 = vmatprep.subr.bf16.mxu0 0
        %831 = vmatpush1.bf16.msra.mxu0 %v732
        %832 = vmatprep.subr.bf16.mxu0 0
        %833 = vmatpush1.bf16.msra.mxu0 %v729
        %834 = vmatprep.subr.bf16.mxu0 0
        %835 = vmatpush1.bf16.msra.mxu0 %v726
        %836 = vmatprep.subr.bf16.mxu0 0
        %837 = vmatpush1.bf16.msra.mxu0 %v723
        %838 = vmatprep.subr.bf16.mxu0 0
        %839 = vmatpush1.bf16.msra.mxu0 %v720
        %840 = vmatprep.subr.bf16.mxu0 0
        %841 = vmatpush1.bf16.msra.mxu0 %v717
        %842 = vmatprep.subr.bf16.mxu0 0
        %843 = vmatpush1.bf16.msra.mxu0 %v714
        %844 = vmatprep.subr.bf16.mxu0 0
        %845 = vmatpush1.bf16.msra.mxu0 %v711
        %846 = vmatprep.subr.bf16.mxu0 0
        %847 = vmatpush2.bf16.msra.mxu0 0
        %848 = vmatprep.subr.bf16.mxu0 0
        %849 = vmatpush2.bf16.msra.mxu0 0
        %850 = vmatprep.subr.bf16.mxu0 0
        %851 = vmatpush2.bf16.msra.mxu0 0
        %852 = vmatprep.subr.bf16.mxu0 0
        %853 = vmatpush2.bf16.msra.mxu0 0
        %854 = vmatprep.subr.bf16.mxu0 0
        %855 = vmatpush2.bf16.msra.mxu0 0
        %856 = vmatprep.subr.bf16.mxu0 0
        %857 = vmatpush2.bf16.msra.mxu0 0
        %858 = vmatprep.subr.bf16.mxu0 0
        %859 = vmatpush2.bf16.msra.mxu0 0
        %860 = vmatprep.subr.bf16.mxu0 0
        %861 = vmatpush2.bf16.msra.mxu0 0
        %862 = vmatprep.mubr.bf16.mxu0 0
        %863 = vmatmul.mubr.bf16.gmra.mxu0 %v593
        %v864 = vpop.f32.mrf.mxu0
        %v865 = vadd.f32 0.0, %v864
        %v866 = vpop.f32.mrf.mxu0
        %v867 = vpop.f32.mrf.mxu0
        %v868 = vadd.f32 0.0, %v867
        %v869 = vpop.f32.mrf.mxu0
        %870 = vmatprep.mubr.bf16.mxu0 0
        %871 = vmatmul.mubr.bf16.gmra.mxu0 %v594
        %v872 = vpop.f32.mrf.mxu0
        %v873 = vadd.f32 0.0, %v872
        %v874 = vpop.f32.mrf.mxu0
        %v875 = vpop.f32.mrf.mxu0
        %v876 = vadd.f32 0.0, %v875
        %v877 = vpop.f32.mrf.mxu0
        %878 = vmatprep.mubr.bf16.mxu0 0
        %879 = vmatmul.mubr.bf16.gmra.mxu0 %v595
        %v880 = vpop.f32.mrf.mxu0
        %v881 = vadd.f32 0.0, %v880
        %v882 = vpop.f32.mrf.mxu0
        %v883 = vpop.f32.mrf.mxu0
        %v884 = vadd.f32 0.0, %v883
        %v885 = vpop.f32.mrf.mxu0
        %886 = vmatprep.mubr.bf16.mxu0 0
        %887 = vmatmul.mubr.bf16.gmra.mxu0 %v596
        %v888 = vpop.f32.mrf.mxu0
        %v889 = vadd.f32 0.0, %v888
        %v890 = vpop.f32.mrf.mxu0
        %v891 = vpop.f32.mrf.mxu0
        %v892 = vadd.f32 0.0, %v891
        %v893 = vpop.f32.mrf.mxu0
        %894 = vdwg.mxu0
        %v895 = vpack.c.bf16 %v796, %v792
        %v896 = vpack.c.bf16 %v798, %v794
        %v897 = vpack.c.bf16 %v868, %v865
        %v898 = vpack.c.bf16 %v806, %v802
        %v899 = vpack.c.bf16 %v808, %v804
        %v900 = vpack.c.bf16 %v876, %v873
        %v901 = vpack.c.bf16 %v816, %v812
        %v902 = vpack.c.bf16 %v818, %v814
        %v903 = vpack.c.bf16 %v884, %v881
        %v904 = vpack.c.bf16 %v826, %v822
        %v905 = vpack.c.bf16 %v828, %v824
        %v906 = vpack.c.bf16 %v892, %v889
        %v907 = vld [vmem:[#allocation5] sm:$0xf]
        %v908 = vld [vmem:[#allocation5 + $0x4] sm:$0xf]
        %v909 = vld [vmem:[#allocation5 + $0x8] sm:$0xf]
        %v910 = vld [vmem:[#allocation5 + $0xc] sm:$0xf]
        %v911 = vld [vmem:[#allocation5 + $0x10] sm:$0xf]
        %v912 = vld [vmem:[#allocation5 + $0x14] sm:$0xf]
        %v913 = vld [vmem:[#allocation5 + $0x18] sm:$0xf]
        %v914 = vld [vmem:[#allocation5 + $0x1c] sm:$0xf]
        %v916 = vsel %vm479, %v895, 0
        %v919 = vsel %vm479, %v898, 0
        %v922 = vsel %vm479, %v901, 0
        %v925 = vsel %vm479, %v904, 0
        %v928 = vsel %vm479, %v896, 0
        %v931 = vsel %vm479, %v899, 0
        %v934 = vsel %vm479, %v902, 0
        %v937 = vsel %vm479, %v905, 0
        %939 = vmatprep.subr.bf16.mxu0 0
        %940 = vmatpush1.bf16.xpose.msra.mxu0 0
        %941 = vmatprep.subr.bf16.mxu0 0
        %942 = vmatpush1.bf16.xpose.msra.mxu0 0
        %943 = vmatprep.subr.bf16.mxu0 0
        %944 = vmatpush1.bf16.xpose.msra.mxu0 0
        %945 = vmatprep.subr.bf16.mxu0 0
        %946 = vmatpush1.bf16.xpose.msra.mxu0 0
        %947 = vmatprep.subr.bf16.mxu0 0
        %948 = vmatpush1.bf16.xpose.msra.mxu0 %v937
        %949 = vmatprep.subr.bf16.mxu0 0
        %950 = vmatpush1.bf16.xpose.msra.mxu0 %v934
        %951 = vmatprep.subr.bf16.mxu0 0
        %952 = vmatpush1.bf16.xpose.msra.mxu0 %v931
        %953 = vmatprep.subr.bf16.mxu0 0
        %954 = vmatpush1.bf16.xpose.msra.mxu0 %v928
        %955 = vmatprep.subr.bf16.mxu0 0
        %956 = vmatpush2.bf16.xpose.msra.mxu0 0
        %957 = vmatprep.subr.bf16.mxu0 0
        %958 = vmatpush2.bf16.xpose.msra.mxu0 0
        %959 = vmatprep.subr.bf16.mxu0 0
        %960 = vmatpush2.bf16.xpose.msra.mxu0 0
        %961 = vmatprep.subr.bf16.mxu0 0
        %962 = vmatpush2.bf16.xpose.msra.mxu0 0
        %963 = vmatprep.subr.bf16.mxu0 0
        %964 = vmatpush2.bf16.xpose.msra.mxu0 0
        %965 = vmatprep.subr.bf16.mxu0 0
        %966 = vmatpush2.bf16.xpose.msra.mxu0 0
        %967 = vmatprep.subr.bf16.mxu0 0
        %968 = vmatpush2.bf16.xpose.msra.mxu0 0
        %969 = vmatprep.subr.bf16.mxu0 0
        %970 = vmatpush2.bf16.xpose.msra.mxu0 0
        %971 = vmatprep.mubr.bf16.mxu0 0
        %972 = vmatmul.mubr.bf16.gmra.mxu0 %v916
        %v973 = vpop.f32.mrf.mxu0
        %v974 = vadd.f32 0.0, %v973
        %v975 = vpop.f32.mrf.mxu0
        %v976 = vpop.f32.mrf.mxu0
        %v977 = vadd.f32 0.0, %v976
        %v978 = vpop.f32.mrf.mxu0
        %979 = vmatprep.mubr.bf16.mxu0 0
        %980 = vmatmul.mubr.bf16.gmra.mxu0 %v919
        %v981 = vpop.f32.mrf.mxu0
        %v982 = vadd.f32 0.0, %v981
        %v983 = vpop.f32.mrf.mxu0
        %v984 = vpop.f32.mrf.mxu0
        %v985 = vadd.f32 0.0, %v984
        %v986 = vpop.f32.mrf.mxu0
        %987 = vmatprep.mubr.bf16.mxu0 0
        %988 = vmatmul.mubr.bf16.gmra.mxu0 %v922
        %v989 = vpop.f32.mrf.mxu0
        %v990 = vadd.f32 0.0, %v989
        %v991 = vpop.f32.mrf.mxu0
        %v992 = vpop.f32.mrf.mxu0
        %v993 = vadd.f32 0.0, %v992
        %v994 = vpop.f32.mrf.mxu0
        %995 = vmatprep.mubr.bf16.mxu0 0
        %996 = vmatmul.mubr.bf16.gmra.mxu0 %v925
        %v997 = vpop.f32.mrf.mxu0
        %v998 = vadd.f32 0.0, %v997
        %v999 = vpop.f32.mrf.mxu0
        %v1000 = vpop.f32.mrf.mxu0
        %v1001 = vadd.f32 0.0, %v1000
        %v1002 = vpop.f32.mrf.mxu0
        %1003 = vdwg.mxu0
        %vm1004 = vcmask 523264
        %v1005 = vsel %vm1004, %v974, -inf
        %1006 = vmax.xlane.f32.xlu0 %v1005
        %v1007 = vpop.xlane.xlu0 %1006
        %v1008 = vsel %vm1004, %v977, -inf
        %1009 = vmax.xlane.f32.xlu0 %v1008
        %v1010 = vpop.xlane.xlu0 %1009
        %v1011 = vsel %vm1004, %v982, -inf
        %1012 = vmax.xlane.f32.xlu0 %v1011
        %v1013 = vpop.xlane.xlu0 %1012
        %v1014 = vsel %vm1004, %v985, -inf
        %1015 = vmax.xlane.f32.xlu0 %v1014
        %v1016 = vpop.xlane.xlu0 %1015
        %v1017 = vsel %vm1004, %v990, -inf
        %1018 = vmax.xlane.f32.xlu0 %v1017
        %v1019 = vpop.xlane.xlu0 %1018
        %v1020 = vsel %vm1004, %v993, -inf
        %1021 = vmax.xlane.f32.xlu0 %v1020
        %v1022 = vpop.xlane.xlu0 %1021
        %v1023 = vsel %vm1004, %v998, -inf
        %1024 = vmax.xlane.f32.xlu0 %v1023
        %v1025 = vpop.xlane.xlu0 %1024
        %v1026 = vsel %vm1004, %v1001, -inf
        %1027 = vmax.xlane.f32.xlu0 %v1026
        %v1028 = vpop.xlane.xlu0 %1027
        %v1029 = vsub.f32 %v974, %v1007
        %v1030 = vsub.f32 %v977, %v1010
        %v1031 = vsub.f32 %v982, %v1013
        %v1032 = vsub.f32 %v985, %v1016
        %v1033 = vsub.f32 %v990, %v1019
        %v1034 = vsub.f32 %v993, %v1022
        %v1035 = vsub.f32 %v998, %v1025
        %v1036 = vsub.f32 %v1001, %v1028
        %v1037 = vmul.f32 %v1029, 1.442695
        %v1038 = vpow.pop %v1037
        %v1039 = vmul.f32 %v1030, 1.442695
        %v1040 = vpow.pop %v1039
        %v1041 = vmul.f32 %v1031, 1.442695
        %v1042 = vpow.pop %v1041
        %v1043 = vmul.f32 %v1032, 1.442695
        %v1044 = vpow.pop %v1043
        %v1045 = vmul.f32 %v1033, 1.442695
        %v1046 = vpow.pop %v1045
        %v1047 = vmul.f32 %v1034, 1.442695
        %v1048 = vpow.pop %v1047
        %v1049 = vmul.f32 %v1035, 1.442695
        %v1050 = vpow.pop %v1049
        %v1051 = vmul.f32 %v1036, 1.442695
        %v1052 = vpow.pop %v1051
        %v1053 = vsel %vm1004, %v1038, 0.0
        %1054 = vadd.xlane.f32.xlu0 %v1053
        %v1055 = vpop.xlane.xlu0 %1054
        %v1056 = vsel %vm1004, %v1040, 0.0
        %1057 = vadd.xlane.f32.xlu0 %v1056
        %v1058 = vpop.xlane.xlu0 %1057
        %v1059 = vsel %vm1004, %v1042, 0.0
        %1060 = vadd.xlane.f32.xlu0 %v1059
        %v1061 = vpop.xlane.xlu0 %1060
        %v1062 = vsel %vm1004, %v1044, 0.0
        %1063 = vadd.xlane.f32.xlu0 %v1062
        %v1064 = vpop.xlane.xlu0 %1063
        %v1065 = vsel %vm1004, %v1046, 0.0
        %1066 = vadd.xlane.f32.xlu0 %v1065
        %v1067 = vpop.xlane.xlu0 %1066
        %v1068 = vsel %vm1004, %v1048, 0.0
        %1069 = vadd.xlane.f32.xlu0 %v1068
        %v1070 = vpop.xlane.xlu0 %1069
        %v1071 = vsel %vm1004, %v1050, 0.0
        %1072 = vadd.xlane.f32.xlu0 %v1071
        %v1073 = vpop.xlane.xlu0 %1072
        %v1074 = vsel %vm1004, %v1052, 0.0
        %1075 = vadd.xlane.f32.xlu0 %v1074
        %v1076 = vpop.xlane.xlu0 %1075
        %v1077 = vrcp.pop %v1055
        %v1078 = vrcp.pop %v1058
        %v1079 = vrcp.pop %v1061
        %v1080 = vrcp.pop %v1064
        %v1081 = vrcp.pop %v1067
        %v1082 = vrcp.pop %v1070
        %v1083 = vrcp.pop %v1073
        %v1084 = vrcp.pop %v1076
        %v1085 = vmul.f32 %v1038, %v1077
        %v1086 = vmul.f32 %v1040, %v1078
        %v1087 = vmul.f32 %v1042, %v1079
        %v1088 = vmul.f32 %v1044, %v1080
        %v1089 = vmul.f32 %v1046, %v1081
        %v1090 = vmul.f32 %v1048, %v1082
        %v1091 = vmul.f32 %v1050, %v1083
        %v1092 = vmul.f32 %v1052, %v1084
        %v1097 = vunpack.c.l.b16 %v907
        %v1098 = vunpack.c.l.b16 %v908
        %v1099 = vunpack.c.l.b16 %v909
        %v1100 = vunpack.c.l.b16 %v910
        %v1101 = vpack.c.b16 %v1098, %v1097
        %v1102 = vpack.c.b16 %v1100, %v1099
        %v1106 = vsel %vm479, %v897, 0
        %v1109 = vsel %vm479, %v900, 0
        %v1112 = vsel %vm479, %v903, 0
        %v1115 = vsel %vm479, %v906, 0
        %1117 = vmatprep.subr.bf16.mxu0 0
        %1118 = vmatpush1.bf16.msra.mxu0 0
        %1119 = vmatprep.subr.bf16.mxu0 0
        %1120 = vmatpush1.bf16.msra.mxu0 0
        %1121 = vmatprep.subr.bf16.mxu0 0
        %1122 = vmatpush1.bf16.msra.mxu0 0
        %1123 = vmatprep.subr.bf16.mxu0 0
        %1124 = vmatpush1.bf16.msra.mxu0 0
        %1125 = vmatprep.subr.bf16.mxu0 0
        %1126 = vmatpush1.bf16.msra.mxu0 0
        %1127 = vmatprep.subr.bf16.mxu0 0
        %1128 = vmatpush1.bf16.msra.mxu0 0
        %1129 = vmatprep.subr.bf16.mxu0 0
        %1130 = vmatpush1.bf16.msra.mxu0 %v1102
        %1131 = vmatprep.subr.bf16.mxu0 0
        %1132 = vmatpush1.bf16.msra.mxu0 %v1101
        %1133 = vmatprep.subr.bf16.mxu0 0
        %1134 = vmatpush2.bf16.msra.mxu0 0
        %1135 = vmatprep.subr.bf16.mxu0 0
        %1136 = vmatpush2.bf16.msra.mxu0 0
        %1137 = vmatprep.subr.bf16.mxu0 0
        %1138 = vmatpush2.bf16.msra.mxu0 0
        %1139 = vmatprep.subr.bf16.mxu0 0
        %1140 = vmatpush2.bf16.msra.mxu0 0
        %1141 = vmatprep.subr.bf16.mxu0 0
        %1142 = vmatpush2.bf16.msra.mxu0 0
        %1143 = vmatprep.subr.bf16.mxu0 0
        %1144 = vmatpush2.bf16.msra.mxu0 0
        %1145 = vmatprep.subr.bf16.mxu0 0
        %1146 = vmatpush2.bf16.msra.mxu0 0
        %1147 = vmatprep.subr.bf16.mxu0 0
        %1148 = vmatpush2.bf16.msra.mxu0 0
        %1149 = vmatprep.mubr.bf16.mxu0 0
        %1150 = vmatmul.mubr.bf16.gmra.mxu0 %v1106
        %v1151 = vpop.f32.mrf.mxu0
        %v1152 = vadd.f32 0.0, %v1151
        %v1153 = vpop.f32.mrf.mxu0
        %v1154 = vpop.f32.mrf.mxu0
        %v1155 = vadd.f32 0.0, %v1154
        %v1156 = vpop.f32.mrf.mxu0
        %1157 = vmatprep.mubr.bf16.mxu0 0
        %1158 = vmatmul.mubr.bf16.gmra.mxu0 %v1109
        %v1159 = vpop.f32.mrf.mxu0
        %v1160 = vadd.f32 0.0, %v1159
        %v1161 = vpop.f32.mrf.mxu0
        %v1162 = vpop.f32.mrf.mxu0
        %v1163 = vadd.f32 0.0, %v1162
        %v1164 = vpop.f32.mrf.mxu0
        %1165 = vmatprep.mubr.bf16.mxu0 0
        %1166 = vmatmul.mubr.bf16.gmra.mxu0 %v1112
        %v1167 = vpop.f32.mrf.mxu0
        %v1168 = vadd.f32 0.0, %v1167
        %v1169 = vpop.f32.mrf.mxu0
        %v1170 = vpop.f32.mrf.mxu0
        %v1171 = vadd.f32 0.0, %v1170
        %v1172 = vpop.f32.mrf.mxu0
        %1173 = vmatprep.mubr.bf16.mxu0 0
        %1174 = vmatmul.mubr.bf16.gmra.mxu0 %v1115
        %v1175 = vpop.f32.mrf.mxu0
        %v1176 = vadd.f32 0.0, %v1175
        %v1177 = vpop.f32.mrf.mxu0
        %v1178 = vpop.f32.mrf.mxu0
        %v1179 = vadd.f32 0.0, %v1178
        %v1180 = vpop.f32.mrf.mxu0
        %1181 = vdwg.mxu0
        %v1182 = vpack.c.bf16 %v1155, %v1152
        %v1183 = vpack.c.bf16 %v1163, %v1160
        %v1184 = vpack.c.bf16 %v1171, %v1168
        %v1185 = vpack.c.bf16 %v1179, %v1176
        %v1186 = vpack.c.bf16 %v1086, %v1085
        %v1187 = vpack.c.bf16 %v1088, %v1087
        %v1188 = vpack.c.bf16 %v1090, %v1089
        %v1189 = vpack.c.bf16 %v1092, %v1091
        %1194 = vrot.lane.b32.xlu0 %v895, 96
        %v1195 = vpop.permute.xlu0 %1194
        %1196 = vrot.lane.b32.xlu0 %v898, 96
        %v1197 = vpop.permute.xlu0 %1196
        %1198 = vrot.lane.b32.xlu0 %v901, 96
        %v1199 = vpop.permute.xlu0 %1198
        %1200 = vrot.lane.b32.xlu0 %v904, 96
        %v1201 = vpop.permute.xlu0 %1200
        %1206 = vrot.lane.b32.xlu0 %v896, 96
        %v1207 = vpop.permute.xlu0 %1206
        %1208 = vrot.lane.b32.xlu0 %v899, 96
        %v1209 = vpop.permute.xlu0 %1208
        %1210 = vrot.lane.b32.xlu0 %v902, 96
        %v1211 = vpop.permute.xlu0 %1210
        %1212 = vrot.lane.b32.xlu0 %v905, 96
        %v1213 = vpop.permute.xlu0 %1212
        %v1215 = vsel %vm479, %v1195, 0
        %v1218 = vsel %vm479, %v1197, 0
        %v1221 = vsel %vm479, %v1199, 0
        %v1224 = vsel %vm479, %v1201, 0
        %v1227 = vsel %vm479, %v1207, 0
        %v1230 = vsel %vm479, %v1209, 0
        %v1233 = vsel %vm479, %v1211, 0
        %v1236 = vsel %vm479, %v1213, 0
        %1238 = vmatprep.subr.bf16.mxu0 0
        %1239 = vmatpush1.bf16.xpose.msra.mxu0 0
        %1240 = vmatprep.subr.bf16.mxu0 0
        %1241 = vmatpush1.bf16.xpose.msra.mxu0 0
        %1242 = vmatprep.subr.bf16.mxu0 0
        %1243 = vmatpush1.bf16.xpose.msra.mxu0 0
        %1244 = vmatprep.subr.bf16.mxu0 0
        %1245 = vmatpush1.bf16.xpose.msra.mxu0 0
        %1246 = vmatprep.subr.bf16.mxu0 0
        %1247 = vmatpush1.bf16.xpose.msra.mxu0 %v1236
        %1248 = vmatprep.subr.bf16.mxu0 0
        %1249 = vmatpush1.bf16.xpose.msra.mxu0 %v1233
        %1250 = vmatprep.subr.bf16.mxu0 0
        %1251 = vmatpush1.bf16.xpose.msra.mxu0 %v1230
        %1252 = vmatprep.subr.bf16.mxu0 0
        %1253 = vmatpush1.bf16.xpose.msra.mxu0 %v1227
        %1254 = vmatprep.subr.bf16.mxu0 0
        %1255 = vmatpush2.bf16.xpose.msra.mxu0 0
        %1256 = vmatprep.subr.bf16.mxu0 0
        %1257 = vmatpush2.bf16.xpose.msra.mxu0 0
        %1258 = vmatprep.subr.bf16.mxu0 0
        %1259 = vmatpush2.bf16.xpose.msra.mxu0 0
        %1260 = vmatprep.subr.bf16.mxu0 0
        %1261 = vmatpush2.bf16.xpose.msra.mxu0 0
        %1262 = vmatprep.subr.bf16.mxu0 0
        %1263 = vmatpush2.bf16.xpose.msra.mxu0 0
        %1264 = vmatprep.subr.bf16.mxu0 0
        %1265 = vmatpush2.bf16.xpose.msra.mxu0 0
        %1266 = vmatprep.subr.bf16.mxu0 0
        %1267 = vmatpush2.bf16.xpose.msra.mxu0 0
        %1268 = vmatprep.subr.bf16.mxu0 0
        %1269 = vmatpush2.bf16.xpose.msra.mxu0 0
        %1270 = vmatprep.mubr.bf16.mxu0 0
        %1271 = vmatmul.mubr.bf16.gmra.mxu0 %v1215
        %v1272 = vpop.f32.mrf.mxu0
        %v1273 = vadd.f32 0.0, %v1272
        %v1274 = vpop.f32.mrf.mxu0
        %v1275 = vpop.f32.mrf.mxu0
        %v1276 = vadd.f32 0.0, %v1275
        %v1277 = vpop.f32.mrf.mxu0
        %1278 = vmatprep.mubr.bf16.mxu0 0
        %1279 = vmatmul.mubr.bf16.gmra.mxu0 %v1218
        %v1280 = vpop.f32.mrf.mxu0
        %v1281 = vadd.f32 0.0, %v1280
        %v1282 = vpop.f32.mrf.mxu0
        %v1283 = vpop.f32.mrf.mxu0
        %v1284 = vadd.f32 0.0, %v1283
        %v1285 = vpop.f32.mrf.mxu0
        %1286 = vmatprep.mubr.bf16.mxu0 0
        %1287 = vmatmul.mubr.bf16.gmra.mxu0 %v1221
        %v1288 = vpop.f32.mrf.mxu0
        %v1289 = vadd.f32 0.0, %v1288
        %v1290 = vpop.f32.mrf.mxu0
        %v1291 = vpop.f32.mrf.mxu0
        %v1292 = vadd.f32 0.0, %v1291
        %v1293 = vpop.f32.mrf.mxu0
        %1294 = vmatprep.mubr.bf16.mxu0 0
        %1295 = vmatmul.mubr.bf16.gmra.mxu0 %v1224
        %v1296 = vpop.f32.mrf.mxu0
        %v1297 = vadd.f32 0.0, %v1296
        %v1298 = vpop.f32.mrf.mxu0
        %v1299 = vpop.f32.mrf.mxu0
        %v1300 = vadd.f32 0.0, %v1299
        %v1301 = vpop.f32.mrf.mxu0
        %1302 = vdwg.mxu0
        %v1303 = vsel %vm1004, %v1273, -inf
        %1304 = vmax.xlane.f32.xlu0 %v1303
        %v1305 = vpop.xlane.xlu0 %1304
        %v1306 = vsel %vm1004, %v1276, -inf
        %1307 = vmax.xlane.f32.xlu0 %v1306
        %v1308 = vpop.xlane.xlu0 %1307
        %v1309 = vsel %vm1004, %v1281, -inf
        %1310 = vmax.xlane.f32.xlu0 %v1309
        %v1311 = vpop.xlane.xlu0 %1310
        %v1312 = vsel %vm1004, %v1284, -inf
        %1313 = vmax.xlane.f32.xlu0 %v1312
        %v1314 = vpop.xlane.xlu0 %1313
        %v1315 = vsel %vm1004, %v1289, -inf
        %1316 = vmax.xlane.f32.xlu0 %v1315
        %v1317 = vpop.xlane.xlu0 %1316
        %v1318 = vsel %vm1004, %v1292, -inf
        %1319 = vmax.xlane.f32.xlu0 %v1318
        %v1320 = vpop.xlane.xlu0 %1319
        %v1321 = vsel %vm1004, %v1297, -inf
        %1322 = vmax.xlane.f32.xlu0 %v1321
        %v1323 = vpop.xlane.xlu0 %1322
        %v1324 = vsel %vm1004, %v1300, -inf
        %1325 = vmax.xlane.f32.xlu0 %v1324
        %v1326 = vpop.xlane.xlu0 %1325
        %v1327 = vsub.f32 %v1273, %v1305
        %v1328 = vsub.f32 %v1276, %v1308
        %v1329 = vsub.f32 %v1281, %v1311
        %v1330 = vsub.f32 %v1284, %v1314
        %v1331 = vsub.f32 %v1289, %v1317
        %v1332 = vsub.f32 %v1292, %v1320
        %v1333 = vsub.f32 %v1297, %v1323
        %v1334 = vsub.f32 %v1300, %v1326
        %v1335 = vmul.f32 %v1327, 1.442695
        %v1336 = vpow.pop %v1335
        %v1337 = vmul.f32 %v1328, 1.442695
        %v1338 = vpow.pop %v1337
        %v1339 = vmul.f32 %v1329, 1.442695
        %v1340 = vpow.pop %v1339
        %v1341 = vmul.f32 %v1330, 1.442695
        %v1342 = vpow.pop %v1341
        %v1343 = vmul.f32 %v1331, 1.442695
        %v1344 = vpow.pop %v1343
        %v1345 = vmul.f32 %v1332, 1.442695
        %v1346 = vpow.pop %v1345
        %v1347 = vmul.f32 %v1333, 1.442695
        %v1348 = vpow.pop %v1347
        %v1349 = vmul.f32 %v1334, 1.442695
        %v1350 = vpow.pop %v1349
        %v1351 = vsel %vm1004, %v1336, 0.0
        %1352 = vadd.xlane.f32.xlu0 %v1351
        %v1353 = vpop.xlane.xlu0 %1352
        %v1354 = vsel %vm1004, %v1338, 0.0
        %1355 = vadd.xlane.f32.xlu0 %v1354
        %v1356 = vpop.xlane.xlu0 %1355
        %v1357 = vsel %vm1004, %v1340, 0.0
        %1358 = vadd.xlane.f32.xlu0 %v1357
        %v1359 = vpop.xlane.xlu0 %1358
        %v1360 = vsel %vm1004, %v1342, 0.0
        %1361 = vadd.xlane.f32.xlu0 %v1360
        %v1362 = vpop.xlane.xlu0 %1361
        %v1363 = vsel %vm1004, %v1344, 0.0
        %1364 = vadd.xlane.f32.xlu0 %v1363
        %v1365 = vpop.xlane.xlu0 %1364
        %v1366 = vsel %vm1004, %v1346, 0.0
        %1367 = vadd.xlane.f32.xlu0 %v1366
        %v1368 = vpop.xlane.xlu0 %1367
        %v1369 = vsel %vm1004, %v1348, 0.0
        %1370 = vadd.xlane.f32.xlu0 %v1369
        %v1371 = vpop.xlane.xlu0 %1370
        %v1372 = vsel %vm1004, %v1350, 0.0
        %1373 = vadd.xlane.f32.xlu0 %v1372
        %v1374 = vpop.xlane.xlu0 %1373
        %v1375 = vrcp.pop %v1353
        %v1376 = vrcp.pop %v1356
        %v1377 = vrcp.pop %v1359
        %v1378 = vrcp.pop %v1362
        %v1379 = vrcp.pop %v1365
        %v1380 = vrcp.pop %v1368
        %v1381 = vrcp.pop %v1371
        %v1382 = vrcp.pop %v1374
        %v1383 = vmul.f32 %v1336, %v1375
        %v1384 = vmul.f32 %v1338, %v1376
        %v1385 = vmul.f32 %v1340, %v1377
        %v1386 = vmul.f32 %v1342, %v1378
        %v1387 = vmul.f32 %v1344, %v1379
        %v1388 = vmul.f32 %v1346, %v1380
        %v1389 = vmul.f32 %v1348, %v1381
        %v1390 = vmul.f32 %v1350, %v1382
        %1395 = vrot.lane.b32.xlu0 %v897, 96
        %v1396 = vpop.permute.xlu0 %1395
        %1397 = vrot.lane.b32.xlu0 %v900, 96
        %v1398 = vpop.permute.xlu0 %1397
        %1399 = vrot.lane.b32.xlu0 %v903, 96
        %v1400 = vpop.permute.xlu0 %1399
        %1401 = vrot.lane.b32.xlu0 %v906, 96
        %v1402 = vpop.permute.xlu0 %1401
        %v1407 = vunpack.c.l.b16 %v911
        %v1408 = vunpack.c.l.b16 %v912
        %v1409 = vunpack.c.l.b16 %v913
        %v1410 = vunpack.c.l.b16 %v914
        %v1411 = vpack.c.b16 %v1408, %v1407
        %v1412 = vpack.c.b16 %v1410, %v1409
        %v1416 = vsel %vm479, %v1396, 0
        %v1419 = vsel %vm479, %v1398, 0
        %v1422 = vsel %vm479, %v1400, 0
        %v1425 = vsel %vm479, %v1402, 0
        %1427 = vmatprep.subr.bf16.mxu0 0
        %1428 = vmatpush1.bf16.msra.mxu0 0
        %1429 = vmatprep.subr.bf16.mxu0 0
        %1430 = vmatpush1.bf16.msra.mxu0 0
        %1431 = vmatprep.subr.bf16.mxu0 0
        %1432 = vmatpush1.bf16.msra.mxu0 0
        %1433 = vmatprep.subr.bf16.mxu0 0
        %1434 = vmatpush1.bf16.msra.mxu0 0
        %1435 = vmatprep.subr.bf16.mxu0 0
        %1436 = vmatpush1.bf16.msra.mxu0 0
        %1437 = vmatprep.subr.bf16.mxu0 0
        %1438 = vmatpush1.bf16.msra.mxu0 0
        %1439 = vmatprep.subr.bf16.mxu0 0
        %1440 = vmatpush1.bf16.msra.mxu0 %v1412
        %1441 = vmatprep.subr.bf16.mxu0 0
        %1442 = vmatpush1.bf16.msra.mxu0 %v1411
        %1443 = vmatprep.subr.bf16.mxu0 0
        %1444 = vmatpush2.bf16.msra.mxu0 0
        %1445 = vmatprep.subr.bf16.mxu0 0
        %1446 = vmatpush2.bf16.msra.mxu0 0
        %1447 = vmatprep.subr.bf16.mxu0 0
        %1448 = vmatpush2.bf16.msra.mxu0 0
        %1449 = vmatprep.subr.bf16.mxu0 0
        %1450 = vmatpush2.bf16.msra.mxu0 0
        %1451 = vmatprep.subr.bf16.mxu0 0
        %1452 = vmatpush2.bf16.msra.mxu0 0
        %1453 = vmatprep.subr.bf16.mxu0 0
        %1454 = vmatpush2.bf16.msra.mxu0 0
        %1455 = vmatprep.subr.bf16.mxu0 0
        %1456 = vmatpush2.bf16.msra.mxu0 0
        %1457 = vmatprep.subr.bf16.mxu0 0
        %1458 = vmatpush2.bf16.msra.mxu0 0
        %1459 = vmatprep.mubr.bf16.mxu0 0
        %1460 = vmatmul.mubr.bf16.gmra.mxu0 %v1416
        %v1461 = vpop.f32.mrf.mxu0
        %v1462 = vadd.f32 0.0, %v1461
        %v1463 = vpop.f32.mrf.mxu0
        %v1464 = vpop.f32.mrf.mxu0
        %v1465 = vadd.f32 0.0, %v1464
        %v1466 = vpop.f32.mrf.mxu0
        %1467 = vmatprep.mubr.bf16.mxu0 0
        %1468 = vmatmul.mubr.bf16.gmra.mxu0 %v1419
        %v1469 = vpop.f32.mrf.mxu0
        %v1470 = vadd.f32 0.0, %v1469
        %v1471 = vpop.f32.mrf.mxu0
        %v1472 = vpop.f32.mrf.mxu0
        %v1473 = vadd.f32 0.0, %v1472
        %v1474 = vpop.f32.mrf.mxu0
        %1475 = vmatprep.mubr.bf16.mxu0 0
        %1476 = vmatmul.mubr.bf16.gmra.mxu0 %v1422
        %v1477 = vpop.f32.mrf.mxu0
        %v1478 = vadd.f32 0.0, %v1477
        %v1479 = vpop.f32.mrf.mxu0
        %v1480 = vpop.f32.mrf.mxu0
        %v1481 = vadd.f32 0.0, %v1480
        %v1482 = vpop.f32.mrf.mxu0
        %1483 = vmatprep.mubr.bf16.mxu0 0
        %1484 = vmatmul.mubr.bf16.gmra.mxu0 %v1425
        %v1485 = vpop.f32.mrf.mxu0
        %v1486 = vadd.f32 0.0, %v1485
        %v1487 = vpop.f32.mrf.mxu0
        %v1488 = vpop.f32.mrf.mxu0
        %v1489 = vadd.f32 0.0, %v1488
        %v1490 = vpop.f32.mrf.mxu0
        %1491 = vdwg.mxu0
        %v1492 = vpack.c.bf16 %v1465, %v1462
        %v1493 = vpack.c.bf16 %v1473, %v1470
        %v1494 = vpack.c.bf16 %v1481, %v1478
        %v1495 = vpack.c.bf16 %v1489, %v1486
        %v1496 = vpack.c.bf16 %v1384, %v1383
        %v1497 = vpack.c.bf16 %v1386, %v1385
        %v1498 = vpack.c.bf16 %v1388, %v1387
        %v1499 = vpack.c.bf16 %v1390, %v1389
        %v1501 = vsel %vm1004, %v1496, 0
        %v1504 = vsel %vm1004, %v1497, 0
        %v1507 = vsel %vm1004, %v1498, 0
        %v1510 = vsel %vm1004, %v1499, 0
        %1512 = vmatprep.subr.bf16.mxu0 0
        %1513 = vmatpush1.bf16.msra.mxu0 0
        %1514 = vmatprep.subr.bf16.mxu0 0
        %1515 = vmatpush1.bf16.msra.mxu0 0
        %1516 = vmatprep.subr.bf16.mxu0 0
        %1517 = vmatpush1.bf16.msra.mxu0 0
        %1518 = vmatprep.subr.bf16.mxu0 0
        %1519 = vmatpush1.bf16.msra.mxu0 0
        %1520 = vmatprep.subr.bf16.mxu0 0
        %1521 = vmatpush1.bf16.msra.mxu0 %v1495
        %1522 = vmatprep.subr.bf16.mxu0 0
        %1523 = vmatpush1.bf16.msra.mxu0 %v1494
        %1524 = vmatprep.subr.bf16.mxu0 0
        %1525 = vmatpush1.bf16.msra.mxu0 %v1493
        %1526 = vmatprep.subr.bf16.mxu0 0
        %1527 = vmatpush1.bf16.msra.mxu0 %v1492
        %1528 = vmatprep.subr.bf16.mxu0 0
        %1529 = vmatpush2.bf16.msra.mxu0 0
        %1530 = vmatprep.subr.bf16.mxu0 0
        %1531 = vmatpush2.bf16.msra.mxu0 0
        %1532 = vmatprep.subr.bf16.mxu0 0
        %1533 = vmatpush2.bf16.msra.mxu0 0
        %1534 = vmatprep.subr.bf16.mxu0 0
        %1535 = vmatpush2.bf16.msra.mxu0 0
        %1536 = vmatprep.subr.bf16.mxu0 0
        %1537 = vmatpush2.bf16.msra.mxu0 0
        %1538 = vmatprep.subr.bf16.mxu0 0
        %1539 = vmatpush2.bf16.msra.mxu0 0
        %1540 = vmatprep.subr.bf16.mxu0 0
        %1541 = vmatpush2.bf16.msra.mxu0 0
        %1542 = vmatprep.subr.bf16.mxu0 0
        %1543 = vmatpush2.bf16.msra.mxu0 0
        %1544 = vmatprep.mubr.bf16.mxu0 0
        %1545 = vmatmul.mubr.bf16.gmra.mxu0 %v1501
        %v1546 = vpop.f32.mrf.mxu0
        %v1547 = vadd.f32 0.0, %v1546
        %v1548 = vpop.f32.mrf.mxu0
        %v1549 = vpop.f32.mrf.mxu0
        %v1550 = vadd.f32 0.0, %v1549
        %v1551 = vpop.f32.mrf.mxu0
        %1552 = vmatprep.mubr.bf16.mxu0 0
        %1553 = vmatmul.mubr.bf16.gmra.mxu0 %v1504
        %v1554 = vpop.f32.mrf.mxu0
        %v1555 = vadd.f32 0.0, %v1554
        %v1556 = vpop.f32.mrf.mxu0
        %v1557 = vpop.f32.mrf.mxu0
        %v1558 = vadd.f32 0.0, %v1557
        %v1559 = vpop.f32.mrf.mxu0
        %1560 = vmatprep.mubr.bf16.mxu0 0
        %1561 = vmatmul.mubr.bf16.gmra.mxu0 %v1507
        %v1562 = vpop.f32.mrf.mxu0
        %v1563 = vadd.f32 0.0, %v1562
        %v1564 = vpop.f32.mrf.mxu0
        %v1565 = vpop.f32.mrf.mxu0
        %v1566 = vadd.f32 0.0, %v1565
        %v1567 = vpop.f32.mrf.mxu0
        %1568 = vmatprep.mubr.bf16.mxu0 0
        %1569 = vmatmul.mubr.bf16.gmra.mxu0 %v1510
        %v1570 = vpop.f32.mrf.mxu0
        %v1571 = vadd.f32 0.0, %v1570
        %v1572 = vpop.f32.mrf.mxu0
        %v1573 = vpop.f32.mrf.mxu0
        %v1574 = vadd.f32 0.0, %v1573
        %v1575 = vpop.f32.mrf.mxu0
        %1576 = vdwg.mxu0
        %v1578 = vsel %vm1004, %v1186, 0
        %v1581 = vsel %vm1004, %v1187, 0
        %v1584 = vsel %vm1004, %v1188, 0
        %v1587 = vsel %vm1004, %v1189, 0
        %1589 = vmatprep.subr.bf16.mxu0 0
        %1590 = vmatpush1.bf16.msra.mxu0 0
        %1591 = vmatprep.subr.bf16.mxu0 0
        %1592 = vmatpush1.bf16.msra.mxu0 0
        %1593 = vmatprep.subr.bf16.mxu0 0
        %1594 = vmatpush1.bf16.msra.mxu0 0
        %1595 = vmatprep.subr.bf16.mxu0 0
        %1596 = vmatpush1.bf16.msra.mxu0 0
        %1597 = vmatprep.subr.bf16.mxu0 0
        %1598 = vmatpush1.bf16.msra.mxu0 %v1185
        %1599 = vmatprep.subr.bf16.mxu0 0
        %1600 = vmatpush1.bf16.msra.mxu0 %v1184
        %1601 = vmatprep.subr.bf16.mxu0 0
        %1602 = vmatpush1.bf16.msra.mxu0 %v1183
        %1603 = vmatprep.subr.bf16.mxu0 0
        %1604 = vmatpush1.bf16.msra.mxu0 %v1182
        %1605 = vmatprep.subr.bf16.mxu0 0
        %1606 = vmatpush2.bf16.msra.mxu0 0
        %1607 = vmatprep.subr.bf16.mxu0 0
        %1608 = vmatpush2.bf16.msra.mxu0 0
        %1609 = vmatprep.subr.bf16.mxu0 0
        %1610 = vmatpush2.bf16.msra.mxu0 0
        %1611 = vmatprep.subr.bf16.mxu0 0
        %1612 = vmatpush2.bf16.msra.mxu0 0
        %1613 = vmatprep.subr.bf16.mxu0 0
        %1614 = vmatpush2.bf16.msra.mxu0 0
        %1615 = vmatprep.subr.bf16.mxu0 0
        %1616 = vmatpush2.bf16.msra.mxu0 0
        %1617 = vmatprep.subr.bf16.mxu0 0
        %1618 = vmatpush2.bf16.msra.mxu0 0
        %1619 = vmatprep.subr.bf16.mxu0 0
        %1620 = vmatpush2.bf16.msra.mxu0 0
        %1621 = vmatprep.mubr.bf16.mxu0 0
        %1622 = vmatmul.mubr.bf16.gmra.mxu0 %v1578
        %v1623 = vpop.f32.mrf.mxu0
        %v1624 = vadd.f32 %v1547, %v1623
        %v1625 = vpop.f32.mrf.mxu0
        %v1626 = vpop.f32.mrf.mxu0
        %v1627 = vadd.f32 %v1550, %v1626
        %v1628 = vpop.f32.mrf.mxu0
        %1629 = vmatprep.mubr.bf16.mxu0 0
        %1630 = vmatmul.mubr.bf16.gmra.mxu0 %v1581
        %v1631 = vpop.f32.mrf.mxu0
        %v1632 = vadd.f32 %v1555, %v1631
        %v1633 = vpop.f32.mrf.mxu0
        %v1634 = vpop.f32.mrf.mxu0
        %v1635 = vadd.f32 %v1558, %v1634
        %v1636 = vpop.f32.mrf.mxu0
        %1637 = vmatprep.mubr.bf16.mxu0 0
        %1638 = vmatmul.mubr.bf16.gmra.mxu0 %v1584
        %v1639 = vpop.f32.mrf.mxu0
        %v1640 = vadd.f32 %v1563, %v1639
        %v1641 = vpop.f32.mrf.mxu0
        %v1642 = vpop.f32.mrf.mxu0
        %v1643 = vadd.f32 %v1566, %v1642
        %v1644 = vpop.f32.mrf.mxu0
        %1645 = vmatprep.mubr.bf16.mxu0 0
        %1646 = vmatmul.mubr.bf16.gmra.mxu0 %v1587
        %v1647 = vpop.f32.mrf.mxu0
        %v1648 = vadd.f32 %v1571, %v1647
        %v1649 = vpop.f32.mrf.mxu0
        %v1650 = vpop.f32.mrf.mxu0
        %v1651 = vadd.f32 %v1574, %v1650
        %v1652 = vpop.f32.mrf.mxu0
        %1653 = vdwg.mxu0
        %v1654 = vld [vmem:[%s5] sm:$0x1]
        %v1656 = vlaneseq
        %v1657 = vshrl.u32 %v1656, 7
        %v1658 = vsub.s32 0, %v1657
        %v1659 = vrot.slane %v1654, %v1658
        %v1661 = vadd.f32 %v1624, %v1659
        %v1662 = vadd.f32 %v1627, %v1659
        %v1663 = vadd.f32 %v1632, %v1659
        %v1664 = vadd.f32 %v1635, %v1659
        %v1665 = vadd.f32 %v1640, %v1659
        %v1666 = vadd.f32 %v1643, %v1659
        %v1667 = vadd.f32 %v1648, %v1659
        %v1668 = vadd.f32 %v1651, %v1659
        %v1669 = vadd.f32 %v1661, %v335
        %v1670 = vadd.f32 %v1662, %v336
        %v1671 = vadd.f32 %v1663, %v337
        %v1672 = vadd.f32 %v1664, %v338
        %v1673 = vadd.f32 %v1665, %v339
        %v1674 = vadd.f32 %v1666, %v340
        %v1675 = vadd.f32 %v1667, %v341
        %v1676 = vadd.f32 %v1668, %v342
        %1677 = vst [vmem:[%s328] sm:$0xff] %v1669
        %1678 = vst [vmem:[%s328 + $0x8] sm:$0xff] %v1670
        %1679 = vst [vmem:[%s328 + $0x10] sm:$0xff] %v1671
        %1680 = vst [vmem:[%s328 + $0x18] sm:$0xff] %v1672
        %1681 = vst [vmem:[%s328 + $0x20] sm:$0xff] %v1673
        %1682 = vst [vmem:[%s328 + $0x28] sm:$0xff] %v1674
        %1683 = vst [vmem:[%s328 + $0x30] sm:$0xff] %v1675
        %1684 = vst [vmem:[%s328 + $0x38] sm:$0xff] %v1676
        %s1685 = sand.u32 %s205, 1
        %s1686 = scalar_lea.sflag [#allocation4], %s1685
        %s1687 = sand.u32 %s205, 1
        %s1688 = smul.addr %s1687, 64
        %s1689 = scalar_lea.vmem [#allocation7], %s1688
        // Predicated region
        $region61: #{tpu_custom_call.1} parent=51 // pred_check
          %p1690 = pneg %p215
        $region62: #{tpu_custom_call.1} parent=51 // pred_check_branch
          %1692 = sbr.rel (%p1690) target = $region64
        $region63: #{tpu_custom_call.1} parent=51 // pred_region
          %s1694 = ssub.s32 1024, 1024
          %1695 = vsyncadd %s1686, %s1694
          %s1696 = smul.addr %s24, 8
          %s1697 = smul.addr %s1696, 128
          %s1698 = scalar_lea.hbm %s8, %s1697
          %s1699 = sshll.u32 %s1689, 4
          %s1700 = int_to_ptr.vmem [resolvable:$true] %s1699
          %1705 = dma.vmem_to_hbm [thread:$0]  %s1700, 1024, %s1698, %s1686, 128, 128, 8
        $region64: #{tpu_custom_call.1} parent=51 // pred_fallthru
          _
      $region52: #{tpu_custom_call.1} parent=5 // pred_fallthru
        _
      %p1706 = scmp.le.s32.totalorder 2, %s19
      // Predicated region
      $region65: #{tpu_custom_call.1} parent=5 // pred_check
        %p1707 = pneg %p1706
      $region66: #{tpu_custom_call.1} parent=5 // pred_check_branch
        %1709 = sbr.rel (%p1707) target = $region68
      $region67: #{tpu_custom_call.1} parent=5 // pred_region
        %s1710 = ssub.s32 %s19, 2
        // Predicated region
        $region69: #{tpu_custom_call.1} parent=67 // pred_check
          %p1711 = pneg %p221
        $region70: #{tpu_custom_call.1} parent=67 // pred_check_branch
          %1713 = sbr.rel (%p1711) target = $region72
        $region71: #{tpu_custom_call.1} parent=67 // pred_region
          %s1714 = sand.u32 %s206, 1
          %s1715 = scalar_lea.sflag [#allocation4], %s1714
          %s1716 = sand.u32 %s206, 1
          %s1717 = smul.addr %s1716, 64
          %s1718 = scalar_lea.vmem [#allocation7], %s1717
          %1719 = dma.done %s1715, 1024
        $region72: #{tpu_custom_call.1} parent=67 // pred_fallthru
          _
      $region68: #{tpu_custom_call.1} parent=5 // pred_fallthru
        _
    $region6: #{tpu_custom_call.1} parent=1 // loop_footer
      %s23 = sadd.s32 1, %s19
    $region7: #{tpu_custom_call.1} parent=1 // loop_footer_branch
      %18 = sbr.rel target = $region3
    $region8: #{tpu_custom_call.1} parent=1 // loop_exit
      _
    %1720 = vsyncpa [#allocation3], 1
    %s1721 = scalar_lea.sflag [#allocation3], 1
    %1722 = vsyncpa %s1721, 1
    %1723 = vsyncpa [#allocation6], 1
    %1724 = vsyncpa [#allocation4], 1
    %s1725 = scalar_lea.sflag [#allocation4], 1
    %1726 = vsyncpa %s1725, 1

</llo_original>
